<compile_context>
chip_gen: v6e
topology: v6e:2x2x1
jax: 0.10.0
libtpu: 0.0.40
codegen_flags: <defaults>
</compile_context>

<pallas_src>
import functools

import jax
import jax.numpy as jnp
from jax import lax
from jax.experimental import pallas as pl
from jax.experimental.pallas import tpu as pltpu


_BRANCHES = ("link", "aa", "mod", "unlink")   # packing order along the 4H axis


def _round_up(x, m):
    return (x + m - 1) // m * m


def _pick_tile(n):
    """Lane-dense tile: full (128-padded) extent for small N, 512 for large N."""
    if n <= 512:
        return _round_up(n, 128)
    return 512


# ----------------------------------------------------------------------------
# Phase 1: fused latent computation.
#   latent = relu(feat @ W1cat + b1cat) @ W2blockdiag + b2cat      (N, 4H)
# ----------------------------------------------------------------------------
def _latent_kernel(feat_ref, w1_ref, b1_ref, w2_ref, b2_ref, lat_ref):
    h = jnp.dot(feat_ref[...], w1_ref[...], preferred_element_type=jnp.float32)
    h = jnp.maximum(h + b1_ref[...], 0.0)
    lat_ref[...] = (
        jnp.dot(h, w2_ref[...], preferred_element_type=jnp.float32) + b2_ref[...]
    )


# ----------------------------------------------------------------------------
# Phase 2: per-(i, j) output tile — four gram blocks from the packed latents,
# sigmoids, softmax-weighted mix, and final blend with adj.
# ----------------------------------------------------------------------------
def _gram_mix_kernel(ws_ref, lat_i_ref, lat_j_ref, adj_ref, aa_ref, mod_ref,
                     out_ref, *, hidden):
    lat_i = lat_i_ref[...]          # (TM, 4H) rows of this output tile
    lat_j = lat_j_ref[...]          # (TN, 4H) cols of this output tile

    def gram(s):
        a = lat_i[:, s * hidden:(s + 1) * hidden]
        b = lat_j[:, s * hidden:(s + 1) * hidden]
        # a @ b.T, contracting on the hidden dim (no transpose materialized).
        return lax.dot_general(a, b, (((1,), (1,)), ((), ())),
                               preferred_element_type=jnp.float32)

    def sig(x):
        # sigmoid(x) == 0.5*tanh(0.5*x) + 0.5 : one EUP op + cheap VPU ops.
        return 0.5 * jnp.tanh(0.5 * x) + 0.5

    link_ctx = sig(gram(0))
    aa_ctx = sig(gram(1) * aa_ref[...])
    mod_ctx = sig(gram(2) * mod_ref[...])
    weight_unlink = sig(gram(3))

    w0 = ws_ref[0]
    w1 = ws_ref[1]
    w2 = ws_ref[2]
    weight_link = w0 * link_ctx + w1 * aa_ctx + w2 * mod_ctx

    # adj is not guaranteed to be a 0/1 mask, so keep the arithmetic blend.
    out_ref[...] = (weight_link - weight_unlink) * adj_ref[...] + weight_unlink


# ----------------------------------------------------------------------------
# Wrapper
# ----------------------------------------------------------------------------
@jax.jit
def meta_model_forward(feat, adj, aa, mod, params):
    n, num_feat = feat.shape
    num_hiddens = params["w_link_1"].shape[1]
    hcat = 4 * num_hiddens

    # nn.Softmax() on the 1-D weighted_sum parameter.
    ws = jax.nn.softmax(params["weighted_sum"]).astype(jnp.float32)

    # Fuse the four branch MLPs (plain-JAX param packing, outside the kernel).
    w1 = jnp.concatenate([params[f"w_{b}_1"] for b in _BRANCHES], axis=1)  # (F, 4H)
    b1 = jnp.concatenate([params[f"b_{b}_1"] for b in _BRANCHES], axis=1)  # (1, 4H)
    w2 = jax.scipy.linalg.block_diag(                                      # (4H, 4H)
        *[params[f"w_{b}_2"] for b in _BRANCHES]).astype(jnp.float32)
    b2 = jnp.concatenate([params[f"b_{b}_2"] for b in _BRANCHES], axis=1)  # (1, 4H)

    tile = _pick_tile(n)
    n_pad = _round_up(n, tile)
    pad = n_pad - n
    if pad:
        feat = jnp.pad(feat, ((0, pad), (0, 0)))
        adj = jnp.pad(adj, ((0, pad), (0, pad)))
        aa = jnp.pad(aa, ((0, pad), (0, pad)))
        mod = jnp.pad(mod, ((0, pad), (0, pad)))

    grid_rows = n_pad // tile

    # ---- Phase 1: packed latents (N_pad, 4H), tiled over row blocks. ----
    latent = pl.pallas_call(
        _latent_kernel,
        out_shape=jax.ShapeDtypeStruct((n_pad, hcat), jnp.float32),
        grid=(grid_rows,),
        in_specs=[
            pl.BlockSpec((tile, num_feat), lambda i: (i, 0)),
            pl.BlockSpec((num_feat, hcat), lambda i: (0, 0)),
            pl.BlockSpec((1, hcat), lambda i: (0, 0)),
            pl.BlockSpec((hcat, hcat), lambda i: (0, 0)),
            pl.BlockSpec((1, hcat), lambda i: (0, 0)),
        ],
        out_specs=pl.BlockSpec((tile, hcat), lambda i: (i, 0)),
        compiler_params=pltpu.CompilerParams(
            dimension_semantics=("parallel",)),
    )(feat, w1, b1, w2, b2)

    # ---- Phase 2: tiled gram / mix over the (N_pad, N_pad) output. ----
    smem_spec = pl.BlockSpec(memory_space=pltpu.MemorySpace.SMEM)
    tile_spec = pl.BlockSpec((tile, tile), lambda i, j: (i, j))

    # Explicit VMEM budget: 4 streamed (tile,tile) arrays + 2 latent views,
    # double-buffered, plus margin; floor at 32 MiB (<= physical everywhere).
    est_bytes = 2 * 4 * (4 * tile * tile + 2 * tile * hcat) + (4 << 20)
    vmem_limit = int(max(est_bytes, 32 << 20))

    out = pl.pallas_call(
        functools.partial(_gram_mix_kernel, hidden=num_hiddens),
        out_shape=jax.ShapeDtypeStruct((n_pad, n_pad), jnp.float32),
        grid=(grid_rows, grid_rows),
        in_specs=[
            smem_spec,                                       # softmax weights
            pl.BlockSpec((tile, hcat), lambda i, j: (i, 0)),  # latent rows
            pl.BlockSpec((tile, hcat), lambda i, j: (j, 0)),  # latent cols
            tile_spec,                                        # adj
            tile_spec,                                        # aa
            tile_spec,                                        # mod
        ],
        out_specs=tile_spec,
        compiler_params=pltpu.CompilerParams(
            dimension_semantics=("parallel", "parallel"),
            vmem_limit_bytes=vmem_limit),
    )(ws, latent, latent, adj, aa, mod)

    if pad:
        out = out[:n, :n]
    return out


# ----------------------------------------------------------------------------
# Parameter init (nn.Linear-style, weights stored pre-transposed as (in, out))
# ----------------------------------------------------------------------------
def init_params(key, num_feat, num_hiddens):
    def linear(k, fan_in, fan_out):
        k_w, k_b = jax.random.split(k)
        bound = 1.0 / jnp.sqrt(jnp.float32(fan_in))
        w = jax.random.uniform(k_w, (fan_in, fan_out), jnp.float32, -bound, bound)
        b = jax.random.uniform(k_b, (1, fan_out), jnp.float32, -bound, bound)
        return w, b

    keys = jax.random.split(key, 8)
    params = {}
    layers = [
        ("link_1", num_feat), ("link_2", num_hiddens),
        ("unlink_1", num_feat), ("unlink_2", num_hiddens),
        ("aa_1", num_feat), ("aa_2", num_hiddens),
        ("mod_1", num_feat), ("mod_2", num_hiddens),
    ]
    for k, (name, fan_in) in zip(keys, layers):
        w, b = linear(k, fan_in, num_hiddens)
        params[f"w_{name}"] = w
        params[f"b_{name}"] = b
    params["weighted_sum"] = jnp.zeros((3,), jnp.float32)   # nn.init.zeros_
    return params


# ----------------------------------------------------------------------------
# Pure-JAX reference mirroring the PyTorch forward
# ----------------------------------------------------------------------------
def reference_forward(feat, adj, aa, mod, params):
    def mlp(x, w1, b1, w2, b2):
        return jnp.maximum(x @ w1 + b1, 0.0) @ w2 + b2

    p = params
    latent_link = mlp(feat, p["w_link_1"], p["b_link_1"], p["w_link_2"], p["b_link_2"])
    latent_aa = mlp(feat, p["w_aa_1"], p["b_aa_1"], p["w_aa_2"], p["b_aa_2"])
    latent_mod = mlp(feat, p["w_mod_1"], p["b_mod_1"], p["w_mod_2"], p["b_mod_2"])
    latent_unlink = mlp(feat, p["w_unlink_1"], p["b_unlink_1"],
                        p["w_unlink_2"], p["b_unlink_2"])

    link_ctx = jax.nn.sigmoid(latent_link @ latent_link.T)
    aa_ctx = jax.nn.sigmoid(latent_aa @ latent_aa.T * aa)
    mod_ctx = jax.nn.sigmoid(latent_mod @ latent_mod.T * mod)

    ctx = jnp.stack([link_ctx, aa_ctx, mod_ctx], axis=2)        # (N, N, 3)
    ws = jax.nn.softmax(p["weighted_sum"])
    weight_link = ctx @ ws                                      # (N, N)
    weight_unlink = jax.nn.sigmoid(latent_unlink @ latent_unlink.T)
    return (weight_link - weight_unlink) * adj + weight_unlink


if __name__ == "__main__":
    N, NUM_FEAT, NUM_HIDDENS = 8, 16, 32

    key = jax.random.PRNGKey(0)
    k_param, k_feat, k_adj, k_aa, k_mod = jax.random.split(key, 5)

    params = init_params(k_param, NUM_FEAT, NUM_HIDDENS)

    feat = jax.random.normal(k_feat, (N, NUM_FEAT), jnp.float32)
    adj = (jax.random.uniform(k_adj, (N, N)) > 0.5).astype(jnp.float32)
    aa = jax.random.normal(k_aa, (N, N), jnp.float32)
    mod = jax.random.normal(k_mod, (N, N), jnp.float32)

    out = meta_model_forward(feat, adj, aa, mod, params)
    out = jax.block_until_ready(out)

    ref = reference_forward(feat, adj, aa, mod, params)
    assert out.shape == (N, N)
    assert jnp.allclose(out, ref, atol=1e-5, rtol=1e-5), "mismatch vs JAX reference"

    print("KERNEL_OK")
</pallas_src>

<mosaic_0001>
module attributes {stable_mosaic.version = 11 : i64} {
  func.func @_latent_kernel(%arg0: i32, %arg1: memref<128x16xf32, #tpu.memory_space<vmem>>, %arg2: memref<16x128xf32, #tpu.memory_space<vmem>>, %arg3: memref<1x128xf32, #tpu.memory_space<vmem>>, %arg4: memref<128x128xf32, #tpu.memory_space<vmem>>, %arg5: memref<1x128xf32, #tpu.memory_space<vmem>>, %arg6: memref<128x128xf32, #tpu.memory_space<vmem>>) attributes {dimension_semantics = [#tpu.dimension_semantics<parallel>], iteration_bounds = array<i64: 1>, scalar_prefetch = 0 : i64, scratch_operands = 0 : i64, tpu.core_type = #tpu.core_type<tc>, window_params = [{transform_indices = @transform_0, window_bounds = array<i64: 128, 16>}, {pipeline_mode = #tpu.pipeline_mode<synchronous>, transform_indices = @transform_1, window_bounds = array<i64: 16, 128>}, {pipeline_mode = #tpu.pipeline_mode<synchronous>, transform_indices = @transform_2, window_bounds = array<i64: 1, 128>}, {pipeline_mode = #tpu.pipeline_mode<synchronous>, transform_indices = @transform_3, window_bounds = array<i64: 128, 128>}, {pipeline_mode = #tpu.pipeline_mode<synchronous>, transform_indices = @transform_4, window_bounds = array<i64: 1, 128>}, {transform_indices = @transform_5, window_bounds = array<i64: 128, 128>}]} {
    %c0 = arith.constant 0 : index
    %c0_0 = arith.constant 0 : index
    %0 = vector.load %arg1[%c0, %c0_0] : memref<128x16xf32, #tpu.memory_space<vmem>>, vector<128x16xf32>
    %c0_1 = arith.constant 0 : index
    %c0_2 = arith.constant 0 : index
    %1 = vector.load %arg2[%c0_1, %c0_2] : memref<16x128xf32, #tpu.memory_space<vmem>>, vector<16x128xf32>
    %cst = arith.constant dense<0.000000e+00> : vector<128x128xf32>
    %2 = tpu.matmul %0, %1, %cst {dimension_numbers = #tpu.dot_dimension_numbers<[1], [0], [0], [1], [0, 0, 1, 1], [], []>} : vector<128x16xf32>, vector<16x128xf32>, vector<128x128xf32> -> vector<128x128xf32>
    %c0_3 = arith.constant 0 : index
    %c0_4 = arith.constant 0 : index
    %3 = vector.load %arg3[%c0_3, %c0_4] : memref<1x128xf32, #tpu.memory_space<vmem>>, vector<1x128xf32>
    %4 = vector.broadcast %3 : vector<1x128xf32> to vector<128x128xf32>
    %5 = arith.addf %2, %4 : vector<128x128xf32>
    %cst_5 = arith.constant 0.000000e+00 : f32
    %6 = vector.broadcast %cst_5 : f32 to vector<128x128xf32>
    %7 = arith.maximumf %5, %6 : vector<128x128xf32>
    %c0_6 = arith.constant 0 : index
    %c0_7 = arith.constant 0 : index
    %8 = vector.load %arg4[%c0_6, %c0_7] : memref<128x128xf32, #tpu.memory_space<vmem>>, vector<128x128xf32>
    %cst_8 = arith.constant dense<0.000000e+00> : vector<128x128xf32>
    %9 = tpu.matmul %7, %8, %cst_8 {dimension_numbers = #tpu.dot_dimension_numbers<[1], [0], [0], [1], [0, 0, 1, 1], [], []>} : vector<128x128xf32>, vector<128x128xf32>, vector<128x128xf32> -> vector<128x128xf32>
    %c0_9 = arith.constant 0 : index
    %c0_10 = arith.constant 0 : index
    %10 = vector.load %arg5[%c0_9, %c0_10] : memref<1x128xf32, #tpu.memory_space<vmem>>, vector<1x128xf32>
    %11 = vector.broadcast %10 : vector<1x128xf32> to vector<128x128xf32>
    %12 = arith.addf %9, %11 : vector<128x128xf32>
    %c0_11 = arith.constant 0 : index
    %c0_12 = arith.constant 0 : index
    %13 = vector.load %arg6[%c0_11, %c0_12] : memref<128x128xf32, #tpu.memory_space<vmem>>, vector<128x128xf32>
    tpu.vector_store %arg6[%c0_11, %c0_12], %12 {strides = array<i32>} : memref<128x128xf32, #tpu.memory_space<vmem>>, vector<128x128xf32>,
    return
  }
  func.func @transform_0(%arg0: i32) -> (i32, i32) {
    %c0_i32 = arith.constant 0 : i32
    %c0_i32_0 = arith.constant 0 : i32
    return %arg0, %c0_i32 : i32, i32
  }
  func.func @transform_1(%arg0: i32) -> (i32, i32) {
    %c0_i32 = arith.constant 0 : i32
    %c0_i32_0 = arith.constant 0 : i32
    %c0_i32_1 = arith.constant 0 : i32
    return %c0_i32, %c0_i32_0 : i32, i32
  }
  func.func @transform_2(%arg0: i32) -> (i32, i32) {
    %c0_i32 = arith.constant 0 : i32
    %c0_i32_0 = arith.constant 0 : i32
    %c0_i32_1 = arith.constant 0 : i32
    return %c0_i32, %c0_i32_0 : i32, i32
  }
  func.func @transform_3(%arg0: i32) -> (i32, i32) {
    %c0_i32 = arith.constant 0 : i32
    %c0_i32_0 = arith.constant 0 : i32
    %c0_i32_1 = arith.constant 0 : i32
    return %c0_i32, %c0_i32_0 : i32, i32
  }
  func.func @transform_4(%arg0: i32) -> (i32, i32) {
    %c0_i32 = arith.constant 0 : i32
    %c0_i32_0 = arith.constant 0 : i32
    %c0_i32_1 = arith.constant 0 : i32
    return %c0_i32, %c0_i32_0 : i32, i32
  }
  func.func @transform_5(%arg0: i32) -> (i32, i32) {
    %c0_i32 = arith.constant 0 : i32
    %c0_i32_0 = arith.constant 0 : i32
    return %arg0, %c0_i32 : i32, i32
  }
}

module attributes {stable_mosaic.version = 11 : i64} {
  func.func @_gram_mix_kernel(%arg0: i32, %arg1: i32, %arg2: memref<3xf32, #tpu.memory_space<smem>>, %arg3: memref<128x128xf32, #tpu.memory_space<vmem>>, %arg4: memref<128x128xf32, #tpu.memory_space<vmem>>, %arg5: memref<128x128xf32, #tpu.memory_space<vmem>>, %arg6: memref<128x128xf32, #tpu.memory_space<vmem>>, %arg7: memref<128x128xf32, #tpu.memory_space<vmem>>, %arg8: memref<128x128xf32, #tpu.memory_space<vmem>>) attributes {dimension_semantics = [#tpu.dimension_semantics<parallel>, #tpu.dimension_semantics<parallel>], iteration_bounds = array<i64: 1, 1>, scalar_prefetch = 0 : i64, scratch_operands = 0 : i64, tpu.core_type = #tpu.core_type<tc>, window_params = [{transform_indices = @transform_0, window_bounds = array<i64: 3>}, {transform_indices = @transform_1, window_bounds = array<i64: 128, 128>}, {transform_indices = @transform_2, window_bounds = array<i64: 128, 128>}, {transform_indices = @transform_3, window_bounds = array<i64: 128, 128>}, {transform_indices = @transform_4, window_bounds = array<i64: 128, 128>}, {transform_indices = @transform_5, window_bounds = array<i64: 128, 128>}, {transform_indices = @transform_6, window_bounds = array<i64: 128, 128>}]} {
    %c0 = arith.constant 0 : index
    %c0_0 = arith.constant 0 : index
    %0 = vector.load %arg3[%c0, %c0_0] : memref<128x128xf32, #tpu.memory_space<vmem>>, vector<128x128xf32>
    %c0_1 = arith.constant 0 : index
    %c0_2 = arith.constant 0 : index
    %1 = vector.load %arg4[%c0_1, %c0_2] : memref<128x128xf32, #tpu.memory_space<vmem>>, vector<128x128xf32>
    %2 = vector.extract_strided_slice %0 {offsets = [0, 0], sizes = [128, 32], strides = [1, 1]} : vector<128x128xf32> to vector<128x32xf32>
    %3 = vector.extract_strided_slice %1 {offsets = [0, 0], sizes = [128, 32], strides = [1, 1]} : vector<128x128xf32> to vector<128x32xf32>
    %cst = arith.constant dense<0.000000e+00> : vector<128x128xf32>
    %4 = tpu.matmul %2, %3, %cst {dimension_numbers = #tpu.dot_dimension_numbers<[1], [1], [0], [0], [0, 0, 1, 0], [], []>} : vector<128x32xf32>, vector<128x32xf32>, vector<128x128xf32> -> vector<128x128xf32>
    %cst_3 = arith.constant 5.000000e-01 : f32
    %5 = vector.broadcast %cst_3 : f32 to vector<128x128xf32>
    %6 = arith.mulf %5, %4 : vector<128x128xf32>
    %7 = math.tanh %6 : vector<128x128xf32>
    %cst_4 = arith.constant 5.000000e-01 : f32
    %8 = vector.broadcast %cst_4 : f32 to vector<128x128xf32>
    %9 = arith.mulf %8, %7 : vector<128x128xf32>
    %cst_5 = arith.constant 5.000000e-01 : f32
    %10 = vector.broadcast %cst_5 : f32 to vector<128x128xf32>
    %11 = arith.addf %9, %10 : vector<128x128xf32>
    %12 = vector.extract_strided_slice %0 {offsets = [0, 32], sizes = [128, 32], strides = [1, 1]} : vector<128x128xf32> to vector<128x32xf32>
    %13 = vector.extract_strided_slice %1 {offsets = [0, 32], sizes = [128, 32], strides = [1, 1]} : vector<128x128xf32> to vector<128x32xf32>
    %cst_6 = arith.constant dense<0.000000e+00> : vector<128x128xf32>
    %14 = tpu.matmul %12, %13, %cst_6 {dimension_numbers = #tpu.dot_dimension_numbers<[1], [1], [0], [0], [0, 0, 1, 0], [], []>} : vector<128x32xf32>, vector<128x32xf32>, vector<128x128xf32> -> vector<128x128xf32>
    %c0_7 = arith.constant 0 : index
    %c0_8 = arith.constant 0 : index
    %15 = vector.load %arg6[%c0_7, %c0_8] : memref<128x128xf32, #tpu.memory_space<vmem>>, vector<128x128xf32>
    %16 = arith.mulf %14, %15 : vector<128x128xf32>
    %cst_9 = arith.constant 5.000000e-01 : f32
    %17 = vector.broadcast %cst_9 : f32 to vector<128x128xf32>
    %18 = arith.mulf %17, %16 : vector<128x128xf32>
    %19 = math.tanh %18 : vector<128x128xf32>
    %cst_10 = arith.constant 5.000000e-01 : f32
    %20 = vector.broadcast %cst_10 : f32 to vector<128x128xf32>
    %21 = arith.mulf %20, %19 : vector<128x128xf32>
    %cst_11 = arith.constant 5.000000e-01 : f32
    %22 = vector.broadcast %cst_11 : f32 to vector<128x128xf32>
    %23 = arith.addf %21, %22 : vector<128x128xf32>
    %24 = vector.extract_strided_slice %0 {offsets = [0, 64], sizes = [128, 32], strides = [1, 1]} : vector<128x128xf32> to vector<128x32xf32>
    %25 = vector.extract_strided_slice %1 {offsets = [0, 64], sizes = [128, 32], strides = [1, 1]} : vector<128x128xf32> to vector<128x32xf32>
    %cst_12 = arith.constant dense<0.000000e+00> : vector<128x128xf32>
    %26 = tpu.matmul %24, %25, %cst_12 {dimension_numbers = #tpu.dot_dimension_numbers<[1], [1], [0], [0], [0, 0, 1, 0], [], []>} : vector<128x32xf32>, vector<128x32xf32>, vector<128x128xf32> -> vector<128x128xf32>
    %c0_13 = arith.constant 0 : index
    %c0_14 = arith.constant 0 : index
    %27 = vector.load %arg7[%c0_13, %c0_14] : memref<128x128xf32, #tpu.memory_space<vmem>>, vector<128x128xf32>
    %28 = arith.mulf %26, %27 : vector<128x128xf32>
    %cst_15 = arith.constant 5.000000e-01 : f32
    %29 = vector.broadcast %cst_15 : f32 to vector<128x128xf32>
    %30 = arith.mulf %29, %28 : vector<128x128xf32>
    %31 = math.tanh %30 : vector<128x128xf32>
    %cst_16 = arith.constant 5.000000e-01 : f32
    %32 = vector.broadcast %cst_16 : f32 to vector<128x128xf32>
    %33 = arith.mulf %32, %31 : vector<128x128xf32>
    %cst_17 = arith.constant 5.000000e-01 : f32
    %34 = vector.broadcast %cst_17 : f32 to vector<128x128xf32>
    %35 = arith.addf %33, %34 : vector<128x128xf32>
    %36 = vector.extract_strided_slice %0 {offsets = [0, 96], sizes = [128, 32], strides = [1, 1]} : vector<128x128xf32> to vector<128x32xf32>
    %37 = vector.extract_strided_slice %1 {offsets = [0, 96], sizes = [128, 32], strides = [1, 1]} : vector<128x128xf32> to vector<128x32xf32>
    %cst_18 = arith.constant dense<0.000000e+00> : vector<128x128xf32>
    %38 = tpu.matmul %36, %37, %cst_18 {dimension_numbers = #tpu.dot_dimension_numbers<[1], [1], [0], [0], [0, 0, 1, 0], [], []>} : vector<128x32xf32>, vector<128x32xf32>, vector<128x128xf32> -> vector<128x128xf32>
    %cst_19 = arith.constant 5.000000e-01 : f32
    %39 = vector.broadcast %cst_19 : f32 to vector<128x128xf32>
    %40 = arith.mulf %39, %38 : vector<128x128xf32>
    %41 = math.tanh %40 : vector<128x128xf32>
    %cst_20 = arith.constant 5.000000e-01 : f32
    %42 = vector.broadcast %cst_20 : f32 to vector<128x128xf32>
    %43 = arith.mulf %42, %41 : vector<128x128xf32>
    %cst_21 = arith.constant 5.000000e-01 : f32
    %44 = vector.broadcast %cst_21 : f32 to vector<128x128xf32>
    %45 = arith.addf %43, %44 : vector<128x128xf32>
    %c0_22 = arith.constant 0 : index
    %46 = memref.load %arg2[%c0_22] : memref<3xf32, #tpu.memory_space<smem>>
    %c1 = arith.constant 1 : index
    %47 = memref.load %arg2[%c1] : memref<3xf32, #tpu.memory_space<smem>>
    %c2 = arith.constant 2 : index
    %48 = memref.load %arg2[%c2] : memref<3xf32, #tpu.memory_space<smem>>
    %49 = vector.broadcast %46 : f32 to vector<128x128xf32>
    %50 = arith.mulf %49, %11 : vector<128x128xf32>
    %51 = vector.broadcast %47 : f32 to vector<128x128xf32>
    %52 = arith.mulf %51, %23 : vector<128x128xf32>
    %53 = arith.addf %50, %52 : vector<128x128xf32>
    %54 = vector.broadcast %48 : f32 to vector<128x128xf32>
    %55 = arith.mulf %54, %35 : vector<128x128xf32>
    %56 = arith.addf %53, %55 : vector<128x128xf32>
    %57 = arith.subf %56, %45 : vector<128x128xf32>
    %c0_23 = arith.constant 0 : index
    %c0_24 = arith.constant 0 : index
    %58 = vector.load %arg5[%c0_23, %c0_24] : memref<128x128xf32, #tpu.memory_space<vmem>>, vector<128x128xf32>
    %59 = arith.mulf %57, %58 : vector<128x128xf32>
    %60 = arith.addf %59, %45 : vector<128x128xf32>
    %c0_25 = arith.constant 0 : index
    %c0_26 = arith.constant 0 : index
    %61 = vector.load %arg8[%c0_25, %c0_26] : memref<128x128xf32, #tpu.memory_space<vmem>>, vector<128x128xf32>
    tpu.vector_store %arg8[%c0_25, %c0_26], %60 {strides = array<i32>} : memref<128x128xf32, #tpu.memory_space<vmem>>, vector<128x128xf32>,
    return
  }
  func.func @transform_0(%arg0: i32, %arg1: i32) -> i32 {
    %c0_i32 = arith.constant 0 : i32
    %c0_i32_0 = arith.constant 0 : i32
    return %c0_i32 : i32
  }
  func.func @transform_1(%arg0: i32, %arg1: i32) -> (i32, i32) {
    %c0_i32 = arith.constant 0 : i32
    %c0_i32_0 = arith.constant 0 : i32
    return %arg0, %c0_i32 : i32, i32
  }
  func.func @transform_2(%arg0: i32, %arg1: i32) -> (i32, i32) {
    %c0_i32 = arith.constant 0 : i32
    %c0_i32_0 = arith.constant 0 : i32
    return %arg1, %c0_i32 : i32, i32
  }
  func.func @transform_3(%arg0: i32, %arg1: i32) -> (i32, i32) {
    %c0_i32 = arith.constant 0 : i32
    return %arg0, %arg1 : i32, i32
  }
  func.func @transform_4(%arg0: i32, %arg1: i32) -> (i32, i32) {
    %c0_i32 = arith.constant 0 : i32
    return %arg0, %arg1 : i32, i32
  }
  func.func @transform_5(%arg0: i32, %arg1: i32) -> (i32, i32) {
    %c0_i32 = arith.constant 0 : i32
    return %arg0, %arg1 : i32, i32
  }
  func.func @transform_6(%arg0: i32, %arg1: i32) -> (i32, i32) {
    %c0_i32 = arith.constant 0 : i32
    return %arg0, %arg1 : i32, i32
  }
}

</mosaic_0001>

<llo_original>
// kernel: meta_model_forward.2
$region0: #{meta_model_forward.2}
  #allocation0 [shape = 'u32[]', space=smem, size = 0x4, offset = 0x4, fixed_abs, tag = 'smem constant byte address 0x4 - core index']
  #allocation1 [shape = 'u32[144,128]{1,0:T(1,128)}', space=vmem, size = 0x12000, scoped, tag = 'internal scratch']
  %s0 = inlined_call_operand.vmem [shape: f32[128,16], index: 0, kind: input, shape index: {}]
  %s1 = inlined_call_operand.vmem [shape: f32[16,128], index: 1, kind: input, shape index: {}]
  %s2 = inlined_call_operand.vmem [shape: f32[1,128], index: 2, kind: input, shape index: {}]
  %s3 = inlined_call_operand.vmem [shape: f32[128,128], index: 3, kind: input, shape index: {}]
  %s4 = inlined_call_operand.vmem [shape: f32[1,128], index: 4, kind: input, shape index: {}]
  %s5 = inlined_call_operand.vmem [shape: f32[128,128], index: 5, kind: output, shape index: {}]
  %s6 = sld [smem:[#allocation0]]
  $region30: #{meta_model_forward.2} parent=0
    _
  %s8 = ssub.s32 1, %s6
  %s9 = scalar_select 0, %s8, %s6
  // Predicated region
  $region2: #{meta_model_forward.2} parent=0 // pred_check
    _
  $region3: #{meta_model_forward.2} parent=0 // pred_check_branch
    %11 = sbr.rel (0) target = $region5
  $region4: #{meta_model_forward.2} parent=0 // pred_region
    _
  $region5: #{meta_model_forward.2} parent=0 // pred_fallthru
    _
  // Predicated region
  $region6: #{meta_model_forward.2} parent=0 // pred_check
    _
  $region7: #{meta_model_forward.2} parent=0 // pred_check_branch
    %13 = sbr.rel (0) target = $region9
  $region8: #{meta_model_forward.2} parent=0 // pred_region
    _
  $region9: #{meta_model_forward.2} parent=0 // pred_fallthru
    _
  // Predicated region
  $region10: #{meta_model_forward.2} parent=0 // pred_check
    _
  $region11: #{meta_model_forward.2} parent=0 // pred_check_branch
    %15 = sbr.rel (0) target = $region13
  $region12: #{meta_model_forward.2} parent=0 // pred_region
    _
  $region13: #{meta_model_forward.2} parent=0 // pred_fallthru
    _
  // Predicated region
  $region14: #{meta_model_forward.2} parent=0 // pred_check
    _
  $region15: #{meta_model_forward.2} parent=0 // pred_check_branch
    %17 = sbr.rel (0) target = $region17
  $region16: #{meta_model_forward.2} parent=0 // pred_region
    _
  $region17: #{meta_model_forward.2} parent=0 // pred_fallthru
    _
  // Predicated region
  $region18: #{meta_model_forward.2} parent=0 // pred_check
    _
  $region19: #{meta_model_forward.2} parent=0 // pred_check_branch
    %19 = sbr.rel (0) target = $region21
  $region20: #{meta_model_forward.2} parent=0 // pred_region
    _
  $region21: #{meta_model_forward.2} parent=0 // pred_fallthru
    _
  %v20 = vld [vmem:[%s0] sm:$0xff]
  %v21 = vld [vmem:[%s0 + $0x8] sm:$0xff]
  %v22 = vld [vmem:[%s0 + $0x10] sm:$0xff]
  %v23 = vld [vmem:[%s0 + $0x18] sm:$0xff]
  %v24 = vld [vmem:[%s0 + $0x20] sm:$0xff]
  %v25 = vld [vmem:[%s0 + $0x28] sm:$0xff]
  %v26 = vld [vmem:[%s0 + $0x30] sm:$0xff]
  %v27 = vld [vmem:[%s0 + $0x38] sm:$0xff]
  %v28 = vld [vmem:[%s0 + $0x40] sm:$0xff]
  %v29 = vld [vmem:[%s0 + $0x48] sm:$0xff]
  %v30 = vld [vmem:[%s0 + $0x50] sm:$0xff]
  %v31 = vld [vmem:[%s0 + $0x58] sm:$0xff]
  %v32 = vld [vmem:[%s0 + $0x60] sm:$0xff]
  %v33 = vld [vmem:[%s0 + $0x68] sm:$0xff]
  %v34 = vld [vmem:[%s0 + $0x70] sm:$0xff]
  %v35 = vld [vmem:[%s0 + $0x78] sm:$0xff]
  %v36 = vld [vmem:[%s1] sm:$0xff]
  %v37 = vld [vmem:[%s1 + $0x8] sm:$0xff]
  %v38 = vld [vmem:[%s2] sm:$0x1]
  %v40 = vlaneseq
  %v41 = vshrl.u32 %v40, 7
  %v42 = vsub.s32 0, %v41
  %v43 = vrot.slane %v38, %v42
  %vm45 = vcmask 130048
  %v47 = vsel %vm45, %v20, 0
  %v50 = vsel %vm45, %v21, 0
  %v53 = vsel %vm45, %v22, 0
  %v56 = vsel %vm45, %v23, 0
  %v59 = vsel %vm45, %v24, 0
  %v62 = vsel %vm45, %v25, 0
  %v65 = vsel %vm45, %v26, 0
  %v68 = vsel %vm45, %v27, 0
  %v71 = vsel %vm45, %v28, 0
  %v74 = vsel %vm45, %v29, 0
  %v77 = vsel %vm45, %v30, 0
  %v80 = vsel %vm45, %v31, 0
  %v83 = vsel %vm45, %v32, 0
  %v86 = vsel %vm45, %v33, 0
  %v89 = vsel %vm45, %v34, 0
  %v92 = vsel %vm45, %v35, 0
  %94 = vmatprep.subr.mxu0 0.0
  %95 = vmatpush1.msra.mxu0 0.0
  %96 = vmatprep.subr.mxu0 0.0
  %97 = vmatpush1.msra.mxu0 0.0
  %98 = vmatprep.subr.mxu0 0.0
  %99 = vmatpush1.msra.mxu0 0.0
  %100 = vmatprep.subr.mxu0 0.0
  %101 = vmatpush1.msra.mxu0 0.0
  %102 = vmatprep.subr.mxu0 0.0
  %103 = vmatpush1.msra.mxu0 0.0
  %104 = vmatprep.subr.mxu0 0.0
  %105 = vmatpush1.msra.mxu0 0.0
  %106 = vmatprep.subr.mxu0 0.0
  %107 = vmatpush1.msra.mxu0 0.0
  %108 = vmatprep.subr.mxu0 0.0
  %109 = vmatpush1.msra.mxu0 0.0
  %110 = vmatprep.subr.mxu0 0.0
  %111 = vmatpush1.msra.mxu0 0.0
  %112 = vmatprep.subr.mxu0 0.0
  %113 = vmatpush1.msra.mxu0 0.0
  %114 = vmatprep.subr.mxu0 0.0
  %115 = vmatpush1.msra.mxu0 0.0
  %116 = vmatprep.subr.mxu0 0.0
  %117 = vmatpush1.msra.mxu0 0.0
  %118 = vmatprep.subr.mxu0 0.0
  %119 = vmatpush1.msra.mxu0 0.0
  %120 = vmatprep.subr.mxu0 0.0
  %121 = vmatpush1.msra.mxu0 0.0
  %122 = vmatprep.subr.mxu0 0.0
  %123 = vmatpush1.msra.mxu0 %v37
  %124 = vmatprep.subr.mxu0 0.0
  %125 = vmatpush1.msra.mxu0 %v36
  %126 = vmatprep.subr.mxu0 0.0
  %127 = vmatpush2.msra.mxu0 0.0
  %128 = vmatprep.subr.mxu0 0.0
  %129 = vmatpush2.msra.mxu0 0.0
  %130 = vmatprep.subr.mxu0 0.0
  %131 = vmatpush2.msra.mxu0 0.0
  %132 = vmatprep.subr.mxu0 0.0
  %133 = vmatpush2.msra.mxu0 0.0
  %134 = vmatprep.subr.mxu0 0.0
  %135 = vmatpush2.msra.mxu0 0.0
  %136 = vmatprep.subr.mxu0 0.0
  %137 = vmatpush2.msra.mxu0 0.0
  %138 = vmatprep.subr.mxu0 0.0
  %139 = vmatpush2.msra.mxu0 0.0
  %140 = vmatprep.subr.mxu0 0.0
  %141 = vmatpush2.msra.mxu0 0.0
  %142 = vmatprep.subr.mxu0 0.0
  %143 = vmatpush2.msra.mxu0 0.0
  %144 = vmatprep.subr.mxu0 0.0
  %145 = vmatpush2.msra.mxu0 0.0
  %146 = vmatprep.subr.mxu0 0.0
  %147 = vmatpush2.msra.mxu0 0.0
  %148 = vmatprep.subr.mxu0 0.0
  %149 = vmatpush2.msra.mxu0 0.0
  %150 = vmatprep.subr.mxu0 0.0
  %151 = vmatpush2.msra.mxu0 0.0
  %152 = vmatprep.subr.mxu0 0.0
  %153 = vmatpush2.msra.mxu0 0.0
  %154 = vmatprep.subr.mxu0 0.0
  %155 = vmatpush2.msra.mxu0 0.0
  %156 = vmatprep.subr.mxu0 0.0
  %157 = vmatpush2.msra.mxu0 0.0
  %158 = vmatprep.mubr.f32.mxu0 0.0
  %159 = vmatmul.mubr.f32.gmra.mxu0 %v47
  %v160 = vpop.f32.mrf.mxu0
  %v161 = vadd.f32 %v43, %v160
  %v162 = vpop.f32.mrf.mxu0
  %163 = vmatprep.mubr.f32.mxu0 0.0
  %164 = vmatmul.mubr.f32.gmra.mxu0 %v50
  %v165 = vpop.f32.mrf.mxu0
  %v166 = vadd.f32 %v43, %v165
  %v167 = vpop.f32.mrf.mxu0
  %168 = vmatprep.mubr.f32.mxu0 0.0
  %169 = vmatmul.mubr.f32.gmra.mxu0 %v53
  %v170 = vpop.f32.mrf.mxu0
  %v171 = vadd.f32 %v43, %v170
  %v172 = vpop.f32.mrf.mxu0
  %173 = vmatprep.mubr.f32.mxu0 0.0
  %174 = vmatmul.mubr.f32.gmra.mxu0 %v56
  %v175 = vpop.f32.mrf.mxu0
  %v176 = vadd.f32 %v43, %v175
  %v177 = vpop.f32.mrf.mxu0
  %178 = vmatprep.mubr.f32.mxu0 0.0
  %179 = vmatmul.mubr.f32.gmra.mxu0 %v59
  %v180 = vpop.f32.mrf.mxu0
  %v181 = vadd.f32 %v43, %v180
  %v182 = vpop.f32.mrf.mxu0
  %183 = vmatprep.mubr.f32.mxu0 0.0
  %184 = vmatmul.mubr.f32.gmra.mxu0 %v62
  %v185 = vpop.f32.mrf.mxu0
  %v186 = vadd.f32 %v43, %v185
  %v187 = vpop.f32.mrf.mxu0
  %188 = vmatprep.mubr.f32.mxu0 0.0
  %189 = vmatmul.mubr.f32.gmra.mxu0 %v65
  %v190 = vpop.f32.mrf.mxu0
  %v191 = vadd.f32 %v43, %v190
  %v192 = vpop.f32.mrf.mxu0
  %193 = vmatprep.mubr.f32.mxu0 0.0
  %194 = vmatmul.mubr.f32.gmra.mxu0 %v68
  %v195 = vpop.f32.mrf.mxu0
  %v196 = vadd.f32 %v43, %v195
  %v197 = vpop.f32.mrf.mxu0
  %198 = vmatprep.mubr.f32.mxu0 0.0
  %199 = vmatmul.mubr.f32.gmra.mxu0 %v71
  %v200 = vpop.f32.mrf.mxu0
  %v201 = vadd.f32 %v43, %v200
  %v202 = vpop.f32.mrf.mxu0
  %203 = vmatprep.mubr.f32.mxu0 0.0
  %204 = vmatmul.mubr.f32.gmra.mxu0 %v74
  %v205 = vpop.f32.mrf.mxu0
  %v206 = vadd.f32 %v43, %v205
  %v207 = vpop.f32.mrf.mxu0
  %208 = vmatprep.mubr.f32.mxu0 0.0
  %209 = vmatmul.mubr.f32.gmra.mxu0 %v77
  %v210 = vpop.f32.mrf.mxu0
  %v211 = vadd.f32 %v43, %v210
  %v212 = vpop.f32.mrf.mxu0
  %213 = vmatprep.mubr.f32.mxu0 0.0
  %214 = vmatmul.mubr.f32.gmra.mxu0 %v80
  %v215 = vpop.f32.mrf.mxu0
  %v216 = vadd.f32 %v43, %v215
  %v217 = vpop.f32.mrf.mxu0
  %218 = vmatprep.mubr.f32.mxu0 0.0
  %219 = vmatmul.mubr.f32.gmra.mxu0 %v83
  %v220 = vpop.f32.mrf.mxu0
  %v221 = vadd.f32 %v43, %v220
  %v222 = vpop.f32.mrf.mxu0
  %223 = vmatprep.mubr.f32.mxu0 0.0
  %224 = vmatmul.mubr.f32.gmra.mxu0 %v86
  %v225 = vpop.f32.mrf.mxu0
  %v226 = vadd.f32 %v43, %v225
  %v227 = vpop.f32.mrf.mxu0
  %228 = vmatprep.mubr.f32.mxu0 0.0
  %229 = vmatmul.mubr.f32.gmra.mxu0 %v89
  %v230 = vpop.f32.mrf.mxu0
  %v231 = vadd.f32 %v43, %v230
  %v232 = vpop.f32.mrf.mxu0
  %233 = vmatprep.mubr.f32.mxu0 0.0
  %234 = vmatmul.mubr.f32.gmra.mxu0 %v92
  %v235 = vpop.f32.mrf.mxu0
  %v236 = vadd.f32 %v43, %v235
  %v237 = vpop.f32.mrf.mxu0
  %238 = vdwg.mxu0
  %v239 = vmax.f32 %v161, 0.0
  %v240 = vmax.f32 %v166, 0.0
  %v241 = vmax.f32 %v171, 0.0
  %v242 = vmax.f32 %v176, 0.0
  %v243 = vmax.f32 %v181, 0.0
  %v244 = vmax.f32 %v186, 0.0
  %v245 = vmax.f32 %v191, 0.0
  %v246 = vmax.f32 %v196, 0.0
  %v247 = vmax.f32 %v201, 0.0
  %v248 = vmax.f32 %v206, 0.0
  %v249 = vmax.f32 %v211, 0.0
  %v250 = vmax.f32 %v216, 0.0
  %v251 = vmax.f32 %v221, 0.0
  %v252 = vmax.f32 %v226, 0.0
  %v253 = vmax.f32 %v231, 0.0
  %v254 = vmax.f32 %v236, 0.0
  %v255 = vld [vmem:[%s3] sm:$0xff]
  %v256 = vld [vmem:[%s3 + $0x8] sm:$0xff]
  %v257 = vld [vmem:[%s3 + $0x10] sm:$0xff]
  %v258 = vld [vmem:[%s3 + $0x18] sm:$0xff]
  %v259 = vld [vmem:[%s3 + $0x20] sm:$0xff]
  %v260 = vld [vmem:[%s3 + $0x28] sm:$0xff]
  %v261 = vld [vmem:[%s3 + $0x30] sm:$0xff]
  %v262 = vld [vmem:[%s3 + $0x38] sm:$0xff]
  %v263 = vld [vmem:[%s3 + $0x40] sm:$0xff]
  %v264 = vld [vmem:[%s3 + $0x48] sm:$0xff]
  %v265 = vld [vmem:[%s3 + $0x50] sm:$0xff]
  %v266 = vld [vmem:[%s3 + $0x58] sm:$0xff]
  %v267 = vld [vmem:[%s3 + $0x60] sm:$0xff]
  %v268 = vld [vmem:[%s3 + $0x68] sm:$0xff]
  %v269 = vld [vmem:[%s3 + $0x70] sm:$0xff]
  %v270 = vld [vmem:[%s3 + $0x78] sm:$0xff]
  %v271 = vld [vmem:[%s4] sm:$0x1]
  %v273 = vlaneseq
  %v274 = vshrl.u32 %v273, 7
  %v275 = vsub.s32 0, %v274
  %v276 = vrot.slane %v271, %v275
  %278 = vmatprep.subr.mxu0 0.0
  %279 = vmatpush1.msra.mxu0 %v270
  %280 = vmatprep.subr.mxu0 0.0
  %281 = vmatpush1.msra.mxu0 %v269
  %282 = vmatprep.subr.mxu0 0.0
  %283 = vmatpush1.msra.mxu0 %v268
  %284 = vmatprep.subr.mxu0 0.0
  %285 = vmatpush1.msra.mxu0 %v267
  %286 = vmatprep.subr.mxu0 0.0
  %287 = vmatpush1.msra.mxu0 %v266
  %288 = vmatprep.subr.mxu0 0.0
  %289 = vmatpush1.msra.mxu0 %v265
  %290 = vmatprep.subr.mxu0 0.0
  %291 = vmatpush1.msra.mxu0 %v264
  %292 = vmatprep.subr.mxu0 0.0
  %293 = vmatpush1.msra.mxu0 %v263
  %294 = vmatprep.subr.mxu0 0.0
  %295 = vmatpush1.msra.mxu0 %v262
  %296 = vmatprep.subr.mxu0 0.0
  %297 = vmatpush1.msra.mxu0 %v261
  %298 = vmatprep.subr.mxu0 0.0
  %299 = vmatpush1.msra.mxu0 %v260
  %300 = vmatprep.subr.mxu0 0.0
  %301 = vmatpush1.msra.mxu0 %v259
  %302 = vmatprep.subr.mxu0 0.0
  %303 = vmatpush1.msra.mxu0 %v258
  %304 = vmatprep.subr.mxu0 0.0
  %305 = vmatpush1.msra.mxu0 %v257
  %306 = vmatprep.subr.mxu0 0.0
  %307 = vmatpush1.msra.mxu0 %v256
  %308 = vmatprep.subr.mxu0 0.0
  %309 = vmatpush1.msra.mxu0 %v255
  %310 = vmatprep.subr.mxu0 0.0
  %311 = vmatpush2.msra.mxu0 0.0
  %312 = vmatprep.subr.mxu0 0.0
  %313 = vmatpush2.msra.mxu0 0.0
  %314 = vmatprep.subr.mxu0 0.0
  %315 = vmatpush2.msra.mxu0 0.0
  %316 = vmatprep.subr.mxu0 0.0
  %317 = vmatpush2.msra.mxu0 0.0
  %318 = vmatprep.subr.mxu0 0.0
  %319 = vmatpush2.msra.mxu0 0.0
  %320 = vmatprep.subr.mxu0 0.0
  %321 = vmatpush2.msra.mxu0 0.0
  %322 = vmatprep.subr.mxu0 0.0
  %323 = vmatpush2.msra.mxu0 0.0
  %324 = vmatprep.subr.mxu0 0.0
  %325 = vmatpush2.msra.mxu0 0.0
  %326 = vmatprep.subr.mxu0 0.0
  %327 = vmatpush2.msra.mxu0 0.0
  %328 = vmatprep.subr.mxu0 0.0
  %329 = vmatpush2.msra.mxu0 0.0
  %330 = vmatprep.subr.mxu0 0.0
  %331 = vmatpush2.msra.mxu0 0.0
  %332 = vmatprep.subr.mxu0 0.0
  %333 = vmatpush2.msra.mxu0 0.0
  %334 = vmatprep.subr.mxu0 0.0
  %335 = vmatpush2.msra.mxu0 0.0
  %336 = vmatprep.subr.mxu0 0.0
  %337 = vmatpush2.msra.mxu0 0.0
  %338 = vmatprep.subr.mxu0 0.0
  %339 = vmatpush2.msra.mxu0 0.0
  %340 = vmatprep.subr.mxu0 0.0
  %341 = vmatpush2.msra.mxu0 0.0
  %342 = vmatprep.mubr.f32.mxu0 0.0
  %343 = vmatmul.mubr.f32.gmra.mxu0 %v239
  %v344 = vpop.f32.mrf.mxu0
  %v345 = vadd.f32 %v276, %v344
  %v346 = vpop.f32.mrf.mxu0
  %347 = vmatprep.mubr.f32.mxu0 0.0
  %348 = vmatmul.mubr.f32.gmra.mxu0 %v240
  %v349 = vpop.f32.mrf.mxu0
  %v350 = vadd.f32 %v276, %v349
  %v351 = vpop.f32.mrf.mxu0
  %352 = vmatprep.mubr.f32.mxu0 0.0
  %353 = vmatmul.mubr.f32.gmra.mxu0 %v241
  %v354 = vpop.f32.mrf.mxu0
  %v355 = vadd.f32 %v276, %v354
  %v356 = vpop.f32.mrf.mxu0
  %357 = vmatprep.mubr.f32.mxu0 0.0
  %358 = vmatmul.mubr.f32.gmra.mxu0 %v242
  %v359 = vpop.f32.mrf.mxu0
  %v360 = vadd.f32 %v276, %v359
  %v361 = vpop.f32.mrf.mxu0
  %362 = vmatprep.mubr.f32.mxu0 0.0
  %363 = vmatmul.mubr.f32.gmra.mxu0 %v243
  %v364 = vpop.f32.mrf.mxu0
  %v365 = vadd.f32 %v276, %v364
  %v366 = vpop.f32.mrf.mxu0
  %367 = vmatprep.mubr.f32.mxu0 0.0
  %368 = vmatmul.mubr.f32.gmra.mxu0 %v244
  %v369 = vpop.f32.mrf.mxu0
  %v370 = vadd.f32 %v276, %v369
  %v371 = vpop.f32.mrf.mxu0
  %372 = vmatprep.mubr.f32.mxu0 0.0
  %373 = vmatmul.mubr.f32.gmra.mxu0 %v245
  %v374 = vpop.f32.mrf.mxu0
  %v375 = vadd.f32 %v276, %v374
  %v376 = vpop.f32.mrf.mxu0
  %377 = vmatprep.mubr.f32.mxu0 0.0
  %378 = vmatmul.mubr.f32.gmra.mxu0 %v246
  %v379 = vpop.f32.mrf.mxu0
  %v380 = vadd.f32 %v276, %v379
  %v381 = vpop.f32.mrf.mxu0
  %382 = vmatprep.mubr.f32.mxu0 0.0
  %383 = vmatmul.mubr.f32.gmra.mxu0 %v247
  %v384 = vpop.f32.mrf.mxu0
  %v385 = vadd.f32 %v276, %v384
  %v386 = vpop.f32.mrf.mxu0
  %387 = vmatprep.mubr.f32.mxu0 0.0
  %388 = vmatmul.mubr.f32.gmra.mxu0 %v248
  %v389 = vpop.f32.mrf.mxu0
  %v390 = vadd.f32 %v276, %v389
  %v391 = vpop.f32.mrf.mxu0
  %392 = vmatprep.mubr.f32.mxu0 0.0
  %393 = vmatmul.mubr.f32.gmra.mxu0 %v249
  %v394 = vpop.f32.mrf.mxu0
  %v395 = vadd.f32 %v276, %v394
  %v396 = vpop.f32.mrf.mxu0
  %397 = vmatprep.mubr.f32.mxu0 0.0
  %398 = vmatmul.mubr.f32.gmra.mxu0 %v250
  %v399 = vpop.f32.mrf.mxu0
  %v400 = vadd.f32 %v276, %v399
  %v401 = vpop.f32.mrf.mxu0
  %402 = vmatprep.mubr.f32.mxu0 0.0
  %403 = vmatmul.mubr.f32.gmra.mxu0 %v251
  %v404 = vpop.f32.mrf.mxu0
  %v405 = vadd.f32 %v276, %v404
  %v406 = vpop.f32.mrf.mxu0
  %407 = vmatprep.mubr.f32.mxu0 0.0
  %408 = vmatmul.mubr.f32.gmra.mxu0 %v252
  %v409 = vpop.f32.mrf.mxu0
  %v410 = vadd.f32 %v276, %v409
  %v411 = vpop.f32.mrf.mxu0
  %412 = vmatprep.mubr.f32.mxu0 0.0
  %413 = vmatmul.mubr.f32.gmra.mxu0 %v253
  %v414 = vpop.f32.mrf.mxu0
  %v415 = vadd.f32 %v276, %v414
  %v416 = vpop.f32.mrf.mxu0
  %417 = vmatprep.mubr.f32.mxu0 0.0
  %418 = vmatmul.mubr.f32.gmra.mxu0 %v254
  %v419 = vpop.f32.mrf.mxu0
  %v420 = vadd.f32 %v276, %v419
  %v421 = vpop.f32.mrf.mxu0
  %422 = vdwg.mxu0
  %423 = vst [vmem:[%s5] sm:$0xff] %v345
  %424 = vst [vmem:[%s5 + $0x8] sm:$0xff] %v350
  %425 = vst [vmem:[%s5 + $0x10] sm:$0xff] %v355
  %426 = vst [vmem:[%s5 + $0x18] sm:$0xff] %v360
  %427 = vst [vmem:[%s5 + $0x20] sm:$0xff] %v365
  %428 = vst [vmem:[%s5 + $0x28] sm:$0xff] %v370
  %429 = vst [vmem:[%s5 + $0x30] sm:$0xff] %v375
  %430 = vst [vmem:[%s5 + $0x38] sm:$0xff] %v380
  %431 = vst [vmem:[%s5 + $0x40] sm:$0xff] %v385
  %432 = vst [vmem:[%s5 + $0x48] sm:$0xff] %v390
  %433 = vst [vmem:[%s5 + $0x50] sm:$0xff] %v395
  %434 = vst [vmem:[%s5 + $0x58] sm:$0xff] %v400
  %435 = vst [vmem:[%s5 + $0x60] sm:$0xff] %v405
  %436 = vst [vmem:[%s5 + $0x68] sm:$0xff] %v410
  %437 = vst [vmem:[%s5 + $0x70] sm:$0xff] %v415
  %438 = vst [vmem:[%s5 + $0x78] sm:$0xff] %v420
  // Predicated region
  $region22: #{meta_model_forward.2} parent=0 // pred_check
    _
  $region23: #{meta_model_forward.2} parent=0 // pred_check_branch
    %440 = sbr.rel (0) target = $region25
  $region24: #{meta_model_forward.2} parent=0 // pred_region
    _
  $region25: #{meta_model_forward.2} parent=0 // pred_fallthru
    _
  // Predicated region
  $region26: #{meta_model_forward.2} parent=0 // pred_check
    _
  $region27: #{meta_model_forward.2} parent=0 // pred_check_branch
    %442 = sbr.rel (0) target = $region29
  $region28: #{meta_model_forward.2} parent=0 // pred_region
    _
  $region29: #{meta_model_forward.2} parent=0 // pred_fallthru
    _

// kernel: meta_model_forward.3
$region0: #{meta_model_forward.3}
  #allocation0 [shape = 'u32[]', space=smem, size = 0x4, offset = 0x4, fixed_abs, tag = 'smem constant byte address 0x4 - core index']
  #allocation1 [shape = 'u32[144,128]{1,0:T(1,128)}', space=vmem, size = 0x12000, scoped, tag = 'internal scratch']
  %s0 = inlined_call_operand.vmem [shape: f32[3], index: 0, kind: input, shape index: {}]
  %s1 = inlined_call_operand.vmem [shape: f32[128,128], index: 1, kind: input, shape index: {}, may-alias: {1,2}]
  %s2 = inlined_call_operand.vmem [shape: f32[128,128], index: 2, kind: input, shape index: {}, may-alias: {1,2}]
  %s3 = inlined_call_operand.vmem [shape: f32[128,128], index: 3, kind: input, shape index: {}]
  %s4 = inlined_call_operand.vmem [shape: f32[128,128], index: 4, kind: input, shape index: {}]
  %s5 = inlined_call_operand.vmem [shape: f32[128,128], index: 5, kind: input, shape index: {}]
  %s6 = inlined_call_operand.vmem [shape: f32[128,128], index: 6, kind: output, shape index: {}]
  %s7 = sld [smem:[#allocation0]]
  $region38: #{meta_model_forward.3} parent=0
    _
  %s9 = ssub.s32 1, %s7
  %s10 = scalar_select 0, %s9, %s7
  $region1: #{meta_model_forward.3} parent=0
    #allocation2 [shape = 'u8[512]{0}', space=smem, size = 0x200, scoped, tag = 'input window, operand 0, single buffered']
    #allocation3 [shape = 's32[1]{0}', space=sflag, size = 0x4, scoped, tag = 'scoped memory for meta_model_forward.3']
    %11 = vsyncpa [#allocation3], 0
    // Predicated region
    $region2: #{meta_model_forward.3} parent=1 // pred_check
      _
    $region3: #{meta_model_forward.3} parent=1 // pred_check_branch
      %13 = sbr.rel (0) target = $region5
    $region4: #{meta_model_forward.3} parent=1 // pred_region
      %s15 = ssub.s32 16, 16
      %16 = vsyncadd [#allocation3], %s15
      %s18 = sshll.u32 %s0, 4
      %s19 = int_to_ptr.vmem [resolvable:$true] %s18
      %21 = dma.vmem_to_smem %s19, 16, [#allocation2], [#allocation3]
    $region5: #{meta_model_forward.3} parent=1 // pred_fallthru
      _
    // Predicated region
    $region6: #{meta_model_forward.3} parent=1 // pred_check
      _
    $region7: #{meta_model_forward.3} parent=1 // pred_check_branch
      %23 = sbr.rel (0) target = $region9
    $region8: #{meta_model_forward.3} parent=1 // pred_region
      _
    $region9: #{meta_model_forward.3} parent=1 // pred_fallthru
      _
    // Predicated region
    $region10: #{meta_model_forward.3} parent=1 // pred_check
      _
    $region11: #{meta_model_forward.3} parent=1 // pred_check_branch
      %25 = sbr.rel (0) target = $region13
    $region12: #{meta_model_forward.3} parent=1 // pred_region
      _
    $region13: #{meta_model_forward.3} parent=1 // pred_fallthru
      _
    // Predicated region
    $region14: #{meta_model_forward.3} parent=1 // pred_check
      _
    $region15: #{meta_model_forward.3} parent=1 // pred_check_branch
      %27 = sbr.rel (0) target = $region17
    $region16: #{meta_model_forward.3} parent=1 // pred_region
      _
    $region17: #{meta_model_forward.3} parent=1 // pred_fallthru
      _
    // Predicated region
    $region18: #{meta_model_forward.3} parent=1 // pred_check
      _
    $region19: #{meta_model_forward.3} parent=1 // pred_check_branch
      %29 = sbr.rel (0) target = $region21
    $region20: #{meta_model_forward.3} parent=1 // pred_region
      _
    $region21: #{meta_model_forward.3} parent=1 // pred_fallthru
      _
    // Predicated region
    $region22: #{meta_model_forward.3} parent=1 // pred_check
      _
    $region23: #{meta_model_forward.3} parent=1 // pred_check_branch
      %31 = sbr.rel (0) target = $region25
    $region24: #{meta_model_forward.3} parent=1 // pred_region
      _
    $region25: #{meta_model_forward.3} parent=1 // pred_fallthru
      _
    // Predicated region
    $region26: #{meta_model_forward.3} parent=1 // pred_check
      _
    $region27: #{meta_model_forward.3} parent=1 // pred_check_branch
      %33 = sbr.rel (0) target = $region29
    $region28: #{meta_model_forward.3} parent=1 // pred_region
      %34 = dma.done [#allocation3], 16
    $region29: #{meta_model_forward.3} parent=1 // pred_fallthru
      _
    %35 = sfence
    %v36 = vld [vmem:[%s1] sm:$0xff]
    %v37 = vld [vmem:[%s1 + $0x8] sm:$0xff]
    %v38 = vld [vmem:[%s1 + $0x10] sm:$0xff]
    %v39 = vld [vmem:[%s1 + $0x18] sm:$0xff]
    %v40 = vld [vmem:[%s1 + $0x20] sm:$0xff]
    %v41 = vld [vmem:[%s1 + $0x28] sm:$0xff]
    %v42 = vld [vmem:[%s1 + $0x30] sm:$0xff]
    %v43 = vld [vmem:[%s1 + $0x38] sm:$0xff]
    %v44 = vld [vmem:[%s1 + $0x40] sm:$0xff]
    %v45 = vld [vmem:[%s1 + $0x48] sm:$0xff]
    %v46 = vld [vmem:[%s1 + $0x50] sm:$0xff]
    %v47 = vld [vmem:[%s1 + $0x58] sm:$0xff]
    %v48 = vld [vmem:[%s1 + $0x60] sm:$0xff]
    %v49 = vld [vmem:[%s1 + $0x68] sm:$0xff]
    %v50 = vld [vmem:[%s1 + $0x70] sm:$0xff]
    %v51 = vld [vmem:[%s1 + $0x78] sm:$0xff]
    %v52 = vld [vmem:[%s2] sm:$0xff]
    %v53 = vld [vmem:[%s2 + $0x8] sm:$0xff]
    %v54 = vld [vmem:[%s2 + $0x10] sm:$0xff]
    %v55 = vld [vmem:[%s2 + $0x18] sm:$0xff]
    %v56 = vld [vmem:[%s2 + $0x20] sm:$0xff]
    %v57 = vld [vmem:[%s2 + $0x28] sm:$0xff]
    %v58 = vld [vmem:[%s2 + $0x30] sm:$0xff]
    %v59 = vld [vmem:[%s2 + $0x38] sm:$0xff]
    %v60 = vld [vmem:[%s2 + $0x40] sm:$0xff]
    %v61 = vld [vmem:[%s2 + $0x48] sm:$0xff]
    %v62 = vld [vmem:[%s2 + $0x50] sm:$0xff]
    %v63 = vld [vmem:[%s2 + $0x58] sm:$0xff]
    %v64 = vld [vmem:[%s2 + $0x60] sm:$0xff]
    %v65 = vld [vmem:[%s2 + $0x68] sm:$0xff]
    %v66 = vld [vmem:[%s2 + $0x70] sm:$0xff]
    %v67 = vld [vmem:[%s2 + $0x78] sm:$0xff]
    %vm68 = vcmask 261120
    %v70 = vsel %vm68, %v36, 0
    %v73 = vsel %vm68, %v37, 0
    %v76 = vsel %vm68, %v38, 0
    %v79 = vsel %vm68, %v39, 0
    %v82 = vsel %vm68, %v40, 0
    %v85 = vsel %vm68, %v41, 0
    %v88 = vsel %vm68, %v42, 0
    %v91 = vsel %vm68, %v43, 0
    %v94 = vsel %vm68, %v44, 0
    %v97 = vsel %vm68, %v45, 0
    %v100 = vsel %vm68, %v46, 0
    %v103 = vsel %vm68, %v47, 0
    %v106 = vsel %vm68, %v48, 0
    %v109 = vsel %vm68, %v49, 0
    %v112 = vsel %vm68, %v50, 0
    %v115 = vsel %vm68, %v51, 0
    %v118 = vsel %vm68, %v52, 0
    %v121 = vsel %vm68, %v53, 0
    %v124 = vsel %vm68, %v54, 0
    %v127 = vsel %vm68, %v55, 0
    %v130 = vsel %vm68, %v56, 0
    %v133 = vsel %vm68, %v57, 0
    %v136 = vsel %vm68, %v58, 0
    %v139 = vsel %vm68, %v59, 0
    %v142 = vsel %vm68, %v60, 0
    %v145 = vsel %vm68, %v61, 0
    %v148 = vsel %vm68, %v62, 0
    %v151 = vsel %vm68, %v63, 0
    %v154 = vsel %vm68, %v64, 0
    %v157 = vsel %vm68, %v65, 0
    %v160 = vsel %vm68, %v66, 0
    %v163 = vsel %vm68, %v67, 0
    %165 = vmatprep.subr.mxu0 0.0
    %166 = vmatpush1.xpose.msra.mxu0 %v163
    %167 = vmatprep.subr.mxu0 0.0
    %168 = vmatpush1.xpose.msra.mxu0 %v160
    %169 = vmatprep.subr.mxu0 0.0
    %170 = vmatpush1.xpose.msra.mxu0 %v157
    %171 = vmatprep.subr.mxu0 0.0
    %172 = vmatpush1.xpose.msra.mxu0 %v154
    %173 = vmatprep.subr.mxu0 0.0
    %174 = vmatpush1.xpose.msra.mxu0 %v151
    %175 = vmatprep.subr.mxu0 0.0
    %176 = vmatpush1.xpose.msra.mxu0 %v148
    %177 = vmatprep.subr.mxu0 0.0
    %178 = vmatpush1.xpose.msra.mxu0 %v145
    %179 = vmatprep.subr.mxu0 0.0
    %180 = vmatpush1.xpose.msra.mxu0 %v142
    %181 = vmatprep.subr.mxu0 0.0
    %182 = vmatpush1.xpose.msra.mxu0 %v139
    %183 = vmatprep.subr.mxu0 0.0
    %184 = vmatpush1.xpose.msra.mxu0 %v136
    %185 = vmatprep.subr.mxu0 0.0
    %186 = vmatpush1.xpose.msra.mxu0 %v133
    %187 = vmatprep.subr.mxu0 0.0
    %188 = vmatpush1.xpose.msra.mxu0 %v130
    %189 = vmatprep.subr.mxu0 0.0
    %190 = vmatpush1.xpose.msra.mxu0 %v127
    %191 = vmatprep.subr.mxu0 0.0
    %192 = vmatpush1.xpose.msra.mxu0 %v124
    %193 = vmatprep.subr.mxu0 0.0
    %194 = vmatpush1.xpose.msra.mxu0 %v121
    %195 = vmatprep.subr.mxu0 0.0
    %196 = vmatpush1.xpose.msra.mxu0 %v118
    %197 = vmatprep.subr.mxu0 0.0
    %198 = vmatpush2.xpose.msra.mxu0 0.0
    %199 = vmatprep.subr.mxu0 0.0
    %200 = vmatpush2.xpose.msra.mxu0 0.0
    %201 = vmatprep.subr.mxu0 0.0
    %202 = vmatpush2.xpose.msra.mxu0 0.0
    %203 = vmatprep.subr.mxu0 0.0
    %204 = vmatpush2.xpose.msra.mxu0 0.0
    %205 = vmatprep.subr.mxu0 0.0
    %206 = vmatpush2.xpose.msra.mxu0 0.0
    %207 = vmatprep.subr.mxu0 0.0
    %208 = vmatpush2.xpose.msra.mxu0 0.0
    %209 = vmatprep.subr.mxu0 0.0
    %210 = vmatpush2.xpose.msra.mxu0 0.0
    %211 = vmatprep.subr.mxu0 0.0
    %212 = vmatpush2.xpose.msra.mxu0 0.0
    %213 = vmatprep.subr.mxu0 0.0
    %214 = vmatpush2.xpose.msra.mxu0 0.0
    %215 = vmatprep.subr.mxu0 0.0
    %216 = vmatpush2.xpose.msra.mxu0 0.0
    %217 = vmatprep.subr.mxu0 0.0
    %218 = vmatpush2.xpose.msra.mxu0 0.0
    %219 = vmatprep.subr.mxu0 0.0
    %220 = vmatpush2.xpose.msra.mxu0 0.0
    %221 = vmatprep.subr.mxu0 0.0
    %222 = vmatpush2.xpose.msra.mxu0 0.0
    %223 = vmatprep.subr.mxu0 0.0
    %224 = vmatpush2.xpose.msra.mxu0 0.0
    %225 = vmatprep.subr.mxu0 0.0
    %226 = vmatpush2.xpose.msra.mxu0 0.0
    %227 = vmatprep.subr.mxu0 0.0
    %228 = vmatpush2.xpose.msra.mxu0 0.0
    %229 = vmatprep.mubr.f32.mxu0 0.0
    %230 = vmatmul.mubr.f32.gmra.mxu0 %v70
    %v231 = vpop.f32.mrf.mxu0
    %v232 = vadd.f32 0.0, %v231
    %v233 = vpop.f32.mrf.mxu0
    %234 = vmatprep.mubr.f32.mxu0 0.0
    %235 = vmatmul.mubr.f32.gmra.mxu0 %v73
    %v236 = vpop.f32.mrf.mxu0
    %v237 = vadd.f32 0.0, %v236
    %v238 = vpop.f32.mrf.mxu0
    %239 = vmatprep.mubr.f32.mxu0 0.0
    %240 = vmatmul.mubr.f32.gmra.mxu0 %v76
    %v241 = vpop.f32.mrf.mxu0
    %v242 = vadd.f32 0.0, %v241
    %v243 = vpop.f32.mrf.mxu0
    %244 = vmatprep.mubr.f32.mxu0 0.0
    %245 = vmatmul.mubr.f32.gmra.mxu0 %v79
    %v246 = vpop.f32.mrf.mxu0
    %v247 = vadd.f32 0.0, %v246
    %v248 = vpop.f32.mrf.mxu0
    %249 = vmatprep.mubr.f32.mxu0 0.0
    %250 = vmatmul.mubr.f32.gmra.mxu0 %v82
    %v251 = vpop.f32.mrf.mxu0
    %v252 = vadd.f32 0.0, %v251
    %v253 = vpop.f32.mrf.mxu0
    %254 = vmatprep.mubr.f32.mxu0 0.0
    %255 = vmatmul.mubr.f32.gmra.mxu0 %v85
    %v256 = vpop.f32.mrf.mxu0
    %v257 = vadd.f32 0.0, %v256
    %v258 = vpop.f32.mrf.mxu0
    %259 = vmatprep.mubr.f32.mxu0 0.0
    %260 = vmatmul.mubr.f32.gmra.mxu0 %v88
    %v261 = vpop.f32.mrf.mxu0
    %v262 = vadd.f32 0.0, %v261
    %v263 = vpop.f32.mrf.mxu0
    %264 = vmatprep.mubr.f32.mxu0 0.0
    %265 = vmatmul.mubr.f32.gmra.mxu0 %v91
    %v266 = vpop.f32.mrf.mxu0
    %v267 = vadd.f32 0.0, %v266
    %v268 = vpop.f32.mrf.mxu0
    %269 = vmatprep.mubr.f32.mxu0 0.0
    %270 = vmatmul.mubr.f32.gmra.mxu0 %v94
    %v271 = vpop.f32.mrf.mxu0
    %v272 = vadd.f32 0.0, %v271
    %v273 = vpop.f32.mrf.mxu0
    %274 = vmatprep.mubr.f32.mxu0 0.0
    %275 = vmatmul.mubr.f32.gmra.mxu0 %v97
    %v276 = vpop.f32.mrf.mxu0
    %v277 = vadd.f32 0.0, %v276
    %v278 = vpop.f32.mrf.mxu0
    %279 = vmatprep.mubr.f32.mxu0 0.0
    %280 = vmatmul.mubr.f32.gmra.mxu0 %v100
    %v281 = vpop.f32.mrf.mxu0
    %v282 = vadd.f32 0.0, %v281
    %v283 = vpop.f32.mrf.mxu0
    %284 = vmatprep.mubr.f32.mxu0 0.0
    %285 = vmatmul.mubr.f32.gmra.mxu0 %v103
    %v286 = vpop.f32.mrf.mxu0
    %v287 = vadd.f32 0.0, %v286
    %v288 = vpop.f32.mrf.mxu0
    %289 = vmatprep.mubr.f32.mxu0 0.0
    %290 = vmatmul.mubr.f32.gmra.mxu0 %v106
    %v291 = vpop.f32.mrf.mxu0
    %v292 = vadd.f32 0.0, %v291
    %v293 = vpop.f32.mrf.mxu0
    %294 = vmatprep.mubr.f32.mxu0 0.0
    %295 = vmatmul.mubr.f32.gmra.mxu0 %v109
    %v296 = vpop.f32.mrf.mxu0
    %v297 = vadd.f32 0.0, %v296
    %v298 = vpop.f32.mrf.mxu0
    %299 = vmatprep.mubr.f32.mxu0 0.0
    %300 = vmatmul.mubr.f32.gmra.mxu0 %v112
    %v301 = vpop.f32.mrf.mxu0
    %v302 = vadd.f32 0.0, %v301
    %v303 = vpop.f32.mrf.mxu0
    %304 = vmatprep.mubr.f32.mxu0 0.0
    %305 = vmatmul.mubr.f32.gmra.mxu0 %v115
    %v306 = vpop.f32.mrf.mxu0
    %v307 = vadd.f32 0.0, %v306
    %v308 = vpop.f32.mrf.mxu0
    %309 = vdwg.mxu0
    %v310 = vmul.f32 %v232, 0.5
    %v311 = vmul.f32 %v237, 0.5
    %v312 = vmul.f32 %v242, 0.5
    %v313 = vmul.f32 %v247, 0.5
    %v314 = vmul.f32 %v252, 0.5
    %v315 = vmul.f32 %v257, 0.5
    %v316 = vmul.f32 %v262, 0.5
    %v317 = vmul.f32 %v267, 0.5
    %v318 = vmul.f32 %v272, 0.5
    %v319 = vmul.f32 %v277, 0.5
    %v320 = vmul.f32 %v282, 0.5
    %v321 = vmul.f32 %v287, 0.5
    %v322 = vmul.f32 %v292, 0.5
    %v323 = vmul.f32 %v297, 0.5
    %v324 = vmul.f32 %v302, 0.5
    %v325 = vmul.f32 %v307, 0.5
    %v326 = vtanh.pop %v310
    %v327 = vtanh.pop %v311
    %v328 = vtanh.pop %v312
    %v329 = vtanh.pop %v313
    %v330 = vtanh.pop %v314
    %v331 = vtanh.pop %v315
    %v332 = vtanh.pop %v316
    %v333 = vtanh.pop %v317
    %v334 = vtanh.pop %v318
    %v335 = vtanh.pop %v319
    %v336 = vtanh.pop %v320
    %v337 = vtanh.pop %v321
    %v338 = vtanh.pop %v322
    %v339 = vtanh.pop %v323
    %v340 = vtanh.pop %v324
    %v341 = vtanh.pop %v325
    %v342 = vmul.f32 %v326, 0.5
    %v343 = vmul.f32 %v327, 0.5
    %v344 = vmul.f32 %v328, 0.5
    %v345 = vmul.f32 %v329, 0.5
    %v346 = vmul.f32 %v330, 0.5
    %v347 = vmul.f32 %v331, 0.5
    %v348 = vmul.f32 %v332, 0.5
    %v349 = vmul.f32 %v333, 0.5
    %v350 = vmul.f32 %v334, 0.5
    %v351 = vmul.f32 %v335, 0.5
    %v352 = vmul.f32 %v336, 0.5
    %v353 = vmul.f32 %v337, 0.5
    %v354 = vmul.f32 %v338, 0.5
    %v355 = vmul.f32 %v339, 0.5
    %v356 = vmul.f32 %v340, 0.5
    %v357 = vmul.f32 %v341, 0.5
    %v358 = vadd.f32 %v342, 0.5
    %v359 = vadd.f32 %v343, 0.5
    %v360 = vadd.f32 %v344, 0.5
    %v361 = vadd.f32 %v345, 0.5
    %v362 = vadd.f32 %v346, 0.5
    %v363 = vadd.f32 %v347, 0.5
    %v364 = vadd.f32 %v348, 0.5
    %v365 = vadd.f32 %v349, 0.5
    %v366 = vadd.f32 %v350, 0.5
    %v367 = vadd.f32 %v351, 0.5
    %v368 = vadd.f32 %v352, 0.5
    %v369 = vadd.f32 %v353, 0.5
    %v370 = vadd.f32 %v354, 0.5
    %v371 = vadd.f32 %v355, 0.5
    %v372 = vadd.f32 %v356, 0.5
    %v373 = vadd.f32 %v357, 0.5
    %374 = vrot.lane.b32.xlu0 %v36, 96
    %v375 = vpop.permute.xlu0 %374
    %376 = vrot.lane.b32.xlu0 %v37, 96
    %v377 = vpop.permute.xlu0 %376
    %378 = vrot.lane.b32.xlu0 %v38, 96
    %v379 = vpop.permute.xlu0 %378
    %380 = vrot.lane.b32.xlu0 %v39, 96
    %v381 = vpop.permute.xlu0 %380
    %382 = vrot.lane.b32.xlu0 %v40, 96
    %v383 = vpop.permute.xlu0 %382
    %384 = vrot.lane.b32.xlu0 %v41, 96
    %v385 = vpop.permute.xlu0 %384
    %386 = vrot.lane.b32.xlu0 %v42, 96
    %v387 = vpop.permute.xlu0 %386
    %388 = vrot.lane.b32.xlu0 %v43, 96
    %v389 = vpop.permute.xlu0 %388
    %390 = vrot.lane.b32.xlu0 %v44, 96
    %v391 = vpop.permute.xlu0 %390
    %392 = vrot.lane.b32.xlu0 %v45, 96
    %v393 = vpop.permute.xlu0 %392
    %394 = vrot.lane.b32.xlu0 %v46, 96
    %v395 = vpop.permute.xlu0 %394
    %396 = vrot.lane.b32.xlu0 %v47, 96
    %v397 = vpop.permute.xlu0 %396
    %398 = vrot.lane.b32.xlu0 %v48, 96
    %v399 = vpop.permute.xlu0 %398
    %400 = vrot.lane.b32.xlu0 %v49, 96
    %v401 = vpop.permute.xlu0 %400
    %402 = vrot.lane.b32.xlu0 %v50, 96
    %v403 = vpop.permute.xlu0 %402
    %404 = vrot.lane.b32.xlu0 %v51, 96
    %v405 = vpop.permute.xlu0 %404
    %406 = vrot.lane.b32.xlu0 %v52, 96
    %v407 = vpop.permute.xlu0 %406
    %408 = vrot.lane.b32.xlu0 %v53, 96
    %v409 = vpop.permute.xlu0 %408
    %410 = vrot.lane.b32.xlu0 %v54, 96
    %v411 = vpop.permute.xlu0 %410
    %412 = vrot.lane.b32.xlu0 %v55, 96
    %v413 = vpop.permute.xlu0 %412
    %414 = vrot.lane.b32.xlu0 %v56, 96
    %v415 = vpop.permute.xlu0 %414
    %416 = vrot.lane.b32.xlu0 %v57, 96
    %v417 = vpop.permute.xlu0 %416
    %418 = vrot.lane.b32.xlu0 %v58, 96
    %v419 = vpop.permute.xlu0 %418
    %420 = vrot.lane.b32.xlu0 %v59, 96
    %v421 = vpop.permute.xlu0 %420
    %422 = vrot.lane.b32.xlu0 %v60, 96
    %v423 = vpop.permute.xlu0 %422
    %424 = vrot.lane.b32.xlu0 %v61, 96
    %v425 = vpop.permute.xlu0 %424
    %426 = vrot.lane.b32.xlu0 %v62, 96
    %v427 = vpop.permute.xlu0 %426
    %428 = vrot.lane.b32.xlu0 %v63, 96
    %v429 = vpop.permute.xlu0 %428
    %430 = vrot.lane.b32.xlu0 %v64, 96
    %v431 = vpop.permute.xlu0 %430
    %432 = vrot.lane.b32.xlu0 %v65, 96
    %v433 = vpop.permute.xlu0 %432
    %434 = vrot.lane.b32.xlu0 %v66, 96
    %v435 = vpop.permute.xlu0 %434
    %436 = vrot.lane.b32.xlu0 %v67, 96
    %v437 = vpop.permute.xlu0 %436
    %v438 = vsel %vm68, %v375, 0
    %v440 = vsel %vm68, %v377, 0
    %v442 = vsel %vm68, %v379, 0
    %v444 = vsel %vm68, %v381, 0
    %v446 = vsel %vm68, %v383, 0
    %v448 = vsel %vm68, %v385, 0
    %v450 = vsel %vm68, %v387, 0
    %v452 = vsel %vm68, %v389, 0
    %v454 = vsel %vm68, %v391, 0
    %v456 = vsel %vm68, %v393, 0
    %v458 = vsel %vm68, %v395, 0
    %v460 = vsel %vm68, %v397, 0
    %v462 = vsel %vm68, %v399, 0
    %v464 = vsel %vm68, %v401, 0
    %v466 = vsel %vm68, %v403, 0
    %v468 = vsel %vm68, %v405, 0
    %v470 = vsel %vm68, %v407, 0
    %v472 = vsel %vm68, %v409, 0
    %v474 = vsel %vm68, %v411, 0
    %v476 = vsel %vm68, %v413, 0
    %v478 = vsel %vm68, %v415, 0
    %v480 = vsel %vm68, %v417, 0
    %v482 = vsel %vm68, %v419, 0
    %v484 = vsel %vm68, %v421, 0
    %v486 = vsel %vm68, %v423, 0
    %v488 = vsel %vm68, %v425, 0
    %v490 = vsel %vm68, %v427, 0
    %v492 = vsel %vm68, %v429, 0
    %v494 = vsel %vm68, %v431, 0
    %v496 = vsel %vm68, %v433, 0
    %v498 = vsel %vm68, %v435, 0
    %v500 = vsel %vm68, %v437, 0
    %502 = vmatprep.subr.mxu0 0.0
    %503 = vmatpush1.xpose.msra.mxu0 %v500
    %504 = vmatprep.subr.mxu0 0.0
    %505 = vmatpush1.xpose.msra.mxu0 %v498
    %506 = vmatprep.subr.mxu0 0.0
    %507 = vmatpush1.xpose.msra.mxu0 %v496
    %508 = vmatprep.subr.mxu0 0.0
    %509 = vmatpush1.xpose.msra.mxu0 %v494
    %510 = vmatprep.subr.mxu0 0.0
    %511 = vmatpush1.xpose.msra.mxu0 %v492
    %512 = vmatprep.subr.mxu0 0.0
    %513 = vmatpush1.xpose.msra.mxu0 %v490
    %514 = vmatprep.subr.mxu0 0.0
    %515 = vmatpush1.xpose.msra.mxu0 %v488
    %516 = vmatprep.subr.mxu0 0.0
    %517 = vmatpush1.xpose.msra.mxu0 %v486
    %518 = vmatprep.subr.mxu0 0.0
    %519 = vmatpush1.xpose.msra.mxu0 %v484
    %520 = vmatprep.subr.mxu0 0.0
    %521 = vmatpush1.xpose.msra.mxu0 %v482
    %522 = vmatprep.subr.mxu0 0.0
    %523 = vmatpush1.xpose.msra.mxu0 %v480
    %524 = vmatprep.subr.mxu0 0.0
    %525 = vmatpush1.xpose.msra.mxu0 %v478
    %526 = vmatprep.subr.mxu0 0.0
    %527 = vmatpush1.xpose.msra.mxu0 %v476
    %528 = vmatprep.subr.mxu0 0.0
    %529 = vmatpush1.xpose.msra.mxu0 %v474
    %530 = vmatprep.subr.mxu0 0.0
    %531 = vmatpush1.xpose.msra.mxu0 %v472
    %532 = vmatprep.subr.mxu0 0.0
    %533 = vmatpush1.xpose.msra.mxu0 %v470
    %534 = vmatprep.subr.mxu0 0.0
    %535 = vmatpush2.xpose.msra.mxu0 0.0
    %536 = vmatprep.subr.mxu0 0.0
    %537 = vmatpush2.xpose.msra.mxu0 0.0
    %538 = vmatprep.subr.mxu0 0.0
    %539 = vmatpush2.xpose.msra.mxu0 0.0
    %540 = vmatprep.subr.mxu0 0.0
    %541 = vmatpush2.xpose.msra.mxu0 0.0
    %542 = vmatprep.subr.mxu0 0.0
    %543 = vmatpush2.xpose.msra.mxu0 0.0
    %544 = vmatprep.subr.mxu0 0.0
    %545 = vmatpush2.xpose.msra.mxu0 0.0
    %546 = vmatprep.subr.mxu0 0.0
    %547 = vmatpush2.xpose.msra.mxu0 0.0
    %548 = vmatprep.subr.mxu0 0.0
    %549 = vmatpush2.xpose.msra.mxu0 0.0
    %550 = vmatprep.subr.mxu0 0.0
    %551 = vmatpush2.xpose.msra.mxu0 0.0
    %552 = vmatprep.subr.mxu0 0.0
    %553 = vmatpush2.xpose.msra.mxu0 0.0
    %554 = vmatprep.subr.mxu0 0.0
    %555 = vmatpush2.xpose.msra.mxu0 0.0
    %556 = vmatprep.subr.mxu0 0.0
    %557 = vmatpush2.xpose.msra.mxu0 0.0
    %558 = vmatprep.subr.mxu0 0.0
    %559 = vmatpush2.xpose.msra.mxu0 0.0
    %560 = vmatprep.subr.mxu0 0.0
    %561 = vmatpush2.xpose.msra.mxu0 0.0
    %562 = vmatprep.subr.mxu0 0.0
    %563 = vmatpush2.xpose.msra.mxu0 0.0
    %564 = vmatprep.subr.mxu0 0.0
    %565 = vmatpush2.xpose.msra.mxu0 0.0
    %566 = vmatprep.mubr.f32.mxu0 0.0
    %567 = vmatmul.mubr.f32.gmra.mxu0 %v438
    %v568 = vpop.f32.mrf.mxu0
    %v569 = vadd.f32 0.0, %v568
    %v570 = vpop.f32.mrf.mxu0
    %571 = vmatprep.mubr.f32.mxu0 0.0
    %572 = vmatmul.mubr.f32.gmra.mxu0 %v440
    %v573 = vpop.f32.mrf.mxu0
    %v574 = vadd.f32 0.0, %v573
    %v575 = vpop.f32.mrf.mxu0
    %576 = vmatprep.mubr.f32.mxu0 0.0
    %577 = vmatmul.mubr.f32.gmra.mxu0 %v442
    %v578 = vpop.f32.mrf.mxu0
    %v579 = vadd.f32 0.0, %v578
    %v580 = vpop.f32.mrf.mxu0
    %581 = vmatprep.mubr.f32.mxu0 0.0
    %582 = vmatmul.mubr.f32.gmra.mxu0 %v444
    %v583 = vpop.f32.mrf.mxu0
    %v584 = vadd.f32 0.0, %v583
    %v585 = vpop.f32.mrf.mxu0
    %586 = vmatprep.mubr.f32.mxu0 0.0
    %587 = vmatmul.mubr.f32.gmra.mxu0 %v446
    %v588 = vpop.f32.mrf.mxu0
    %v589 = vadd.f32 0.0, %v588
    %v590 = vpop.f32.mrf.mxu0
    %591 = vmatprep.mubr.f32.mxu0 0.0
    %592 = vmatmul.mubr.f32.gmra.mxu0 %v448
    %v593 = vpop.f32.mrf.mxu0
    %v594 = vadd.f32 0.0, %v593
    %v595 = vpop.f32.mrf.mxu0
    %596 = vmatprep.mubr.f32.mxu0 0.0
    %597 = vmatmul.mubr.f32.gmra.mxu0 %v450
    %v598 = vpop.f32.mrf.mxu0
    %v599 = vadd.f32 0.0, %v598
    %v600 = vpop.f32.mrf.mxu0
    %601 = vmatprep.mubr.f32.mxu0 0.0
    %602 = vmatmul.mubr.f32.gmra.mxu0 %v452
    %v603 = vpop.f32.mrf.mxu0
    %v604 = vadd.f32 0.0, %v603
    %v605 = vpop.f32.mrf.mxu0
    %606 = vmatprep.mubr.f32.mxu0 0.0
    %607 = vmatmul.mubr.f32.gmra.mxu0 %v454
    %v608 = vpop.f32.mrf.mxu0
    %v609 = vadd.f32 0.0, %v608
    %v610 = vpop.f32.mrf.mxu0
    %611 = vmatprep.mubr.f32.mxu0 0.0
    %612 = vmatmul.mubr.f32.gmra.mxu0 %v456
    %v613 = vpop.f32.mrf.mxu0
    %v614 = vadd.f32 0.0, %v613
    %v615 = vpop.f32.mrf.mxu0
    %616 = vmatprep.mubr.f32.mxu0 0.0
    %617 = vmatmul.mubr.f32.gmra.mxu0 %v458
    %v618 = vpop.f32.mrf.mxu0
    %v619 = vadd.f32 0.0, %v618
    %v620 = vpop.f32.mrf.mxu0
    %621 = vmatprep.mubr.f32.mxu0 0.0
    %622 = vmatmul.mubr.f32.gmra.mxu0 %v460
    %v623 = vpop.f32.mrf.mxu0
    %v624 = vadd.f32 0.0, %v623
    %v625 = vpop.f32.mrf.mxu0
    %626 = vmatprep.mubr.f32.mxu0 0.0
    %627 = vmatmul.mubr.f32.gmra.mxu0 %v462
    %v628 = vpop.f32.mrf.mxu0
    %v629 = vadd.f32 0.0, %v628
    %v630 = vpop.f32.mrf.mxu0
    %631 = vmatprep.mubr.f32.mxu0 0.0
    %632 = vmatmul.mubr.f32.gmra.mxu0 %v464
    %v633 = vpop.f32.mrf.mxu0
    %v634 = vadd.f32 0.0, %v633
    %v635 = vpop.f32.mrf.mxu0
    %636 = vmatprep.mubr.f32.mxu0 0.0
    %637 = vmatmul.mubr.f32.gmra.mxu0 %v466
    %v638 = vpop.f32.mrf.mxu0
    %v639 = vadd.f32 0.0, %v638
    %v640 = vpop.f32.mrf.mxu0
    %641 = vmatprep.mubr.f32.mxu0 0.0
    %642 = vmatmul.mubr.f32.gmra.mxu0 %v468
    %v643 = vpop.f32.mrf.mxu0
    %v644 = vadd.f32 0.0, %v643
    %v645 = vpop.f32.mrf.mxu0
    %646 = vdwg.mxu0
    %v647 = vld [vmem:[%s4] sm:$0xff]
    %v648 = vld [vmem:[%s4 + $0x8] sm:$0xff]
    %v649 = vld [vmem:[%s4 + $0x10] sm:$0xff]
    %v650 = vld [vmem:[%s4 + $0x18] sm:$0xff]
    %v651 = vld [vmem:[%s4 + $0x20] sm:$0xff]
    %v652 = vld [vmem:[%s4 + $0x28] sm:$0xff]
    %v653 = vld [vmem:[%s4 + $0x30] sm:$0xff]
    %v654 = vld [vmem:[%s4 + $0x38] sm:$0xff]
    %v655 = vld [vmem:[%s4 + $0x40] sm:$0xff]
    %v656 = vld [vmem:[%s4 + $0x48] sm:$0xff]
    %v657 = vld [vmem:[%s4 + $0x50] sm:$0xff]
    %v658 = vld [vmem:[%s4 + $0x58] sm:$0xff]
    %v659 = vld [vmem:[%s4 + $0x60] sm:$0xff]
    %v660 = vld [vmem:[%s4 + $0x68] sm:$0xff]
    %v661 = vld [vmem:[%s4 + $0x70] sm:$0xff]
    %v662 = vld [vmem:[%s4 + $0x78] sm:$0xff]
    %v663 = vmul.f32 %v569, %v647
    %v664 = vmul.f32 %v574, %v648
    %v665 = vmul.f32 %v579, %v649
    %v666 = vmul.f32 %v584, %v650
    %v667 = vmul.f32 %v589, %v651
    %v668 = vmul.f32 %v594, %v652
    %v669 = vmul.f32 %v599, %v653
    %v670 = vmul.f32 %v604, %v654
    %v671 = vmul.f32 %v609, %v655
    %v672 = vmul.f32 %v614, %v656
    %v673 = vmul.f32 %v619, %v657
    %v674 = vmul.f32 %v624, %v658
    %v675 = vmul.f32 %v629, %v659
    %v676 = vmul.f32 %v634, %v660
    %v677 = vmul.f32 %v639, %v661
    %v678 = vmul.f32 %v644, %v662
    %v679 = vmul.f32 %v663, 0.5
    %v680 = vmul.f32 %v664, 0.5
    %v681 = vmul.f32 %v665, 0.5
    %v682 = vmul.f32 %v666, 0.5
    %v683 = vmul.f32 %v667, 0.5
    %v684 = vmul.f32 %v668, 0.5
    %v685 = vmul.f32 %v669, 0.5
    %v686 = vmul.f32 %v670, 0.5
    %v687 = vmul.f32 %v671, 0.5
    %v688 = vmul.f32 %v672, 0.5
    %v689 = vmul.f32 %v673, 0.5
    %v690 = vmul.f32 %v674, 0.5
    %v691 = vmul.f32 %v675, 0.5
    %v692 = vmul.f32 %v676, 0.5
    %v693 = vmul.f32 %v677, 0.5
    %v694 = vmul.f32 %v678, 0.5
    %v695 = vtanh.pop %v679
    %v696 = vtanh.pop %v680
    %v697 = vtanh.pop %v681
    %v698 = vtanh.pop %v682
    %v699 = vtanh.pop %v683
    %v700 = vtanh.pop %v684
    %v701 = vtanh.pop %v685
    %v702 = vtanh.pop %v686
    %v703 = vtanh.pop %v687
    %v704 = vtanh.pop %v688
    %v705 = vtanh.pop %v689
    %v706 = vtanh.pop %v690
    %v707 = vtanh.pop %v691
    %v708 = vtanh.pop %v692
    %v709 = vtanh.pop %v693
    %v710 = vtanh.pop %v694
    %v711 = vmul.f32 %v695, 0.5
    %v712 = vmul.f32 %v696, 0.5
    %v713 = vmul.f32 %v697, 0.5
    %v714 = vmul.f32 %v698, 0.5
    %v715 = vmul.f32 %v699, 0.5
    %v716 = vmul.f32 %v700, 0.5
    %v717 = vmul.f32 %v701, 0.5
    %v718 = vmul.f32 %v702, 0.5
    %v719 = vmul.f32 %v703, 0.5
    %v720 = vmul.f32 %v704, 0.5
    %v721 = vmul.f32 %v705, 0.5
    %v722 = vmul.f32 %v706, 0.5
    %v723 = vmul.f32 %v707, 0.5
    %v724 = vmul.f32 %v708, 0.5
    %v725 = vmul.f32 %v709, 0.5
    %v726 = vmul.f32 %v710, 0.5
    %v727 = vadd.f32 %v711, 0.5
    %v728 = vadd.f32 %v712, 0.5
    %v729 = vadd.f32 %v713, 0.5
    %v730 = vadd.f32 %v714, 0.5
    %v731 = vadd.f32 %v715, 0.5
    %v732 = vadd.f32 %v716, 0.5
    %v733 = vadd.f32 %v717, 0.5
    %v734 = vadd.f32 %v718, 0.5
    %v735 = vadd.f32 %v719, 0.5
    %v736 = vadd.f32 %v720, 0.5
    %v737 = vadd.f32 %v721, 0.5
    %v738 = vadd.f32 %v722, 0.5
    %v739 = vadd.f32 %v723, 0.5
    %v740 = vadd.f32 %v724, 0.5
    %v741 = vadd.f32 %v725, 0.5
    %v742 = vadd.f32 %v726, 0.5
    %743 = vrot.lane.b32.xlu0 %v36, 64
    %v744 = vpop.permute.xlu0 %743
    %745 = vrot.lane.b32.xlu0 %v37, 64
    %v746 = vpop.permute.xlu0 %745
    %747 = vrot.lane.b32.xlu0 %v38, 64
    %v748 = vpop.permute.xlu0 %747
    %749 = vrot.lane.b32.xlu0 %v39, 64
    %v750 = vpop.permute.xlu0 %749
    %751 = vrot.lane.b32.xlu0 %v40, 64
    %v752 = vpop.permute.xlu0 %751
    %753 = vrot.lane.b32.xlu0 %v41, 64
    %v754 = vpop.permute.xlu0 %753
    %755 = vrot.lane.b32.xlu0 %v42, 64
    %v756 = vpop.permute.xlu0 %755
    %757 = vrot.lane.b32.xlu0 %v43, 64
    %v758 = vpop.permute.xlu0 %757
    %759 = vrot.lane.b32.xlu0 %v44, 64
    %v760 = vpop.permute.xlu0 %759
    %761 = vrot.lane.b32.xlu0 %v45, 64
    %v762 = vpop.permute.xlu0 %761
    %763 = vrot.lane.b32.xlu0 %v46, 64
    %v764 = vpop.permute.xlu0 %763
    %765 = vrot.lane.b32.xlu0 %v47, 64
    %v766 = vpop.permute.xlu0 %765
    %767 = vrot.lane.b32.xlu0 %v48, 64
    %v768 = vpop.permute.xlu0 %767
    %769 = vrot.lane.b32.xlu0 %v49, 64
    %v770 = vpop.permute.xlu0 %769
    %771 = vrot.lane.b32.xlu0 %v50, 64
    %v772 = vpop.permute.xlu0 %771
    %773 = vrot.lane.b32.xlu0 %v51, 64
    %v774 = vpop.permute.xlu0 %773
    %775 = vrot.lane.b32.xlu0 %v52, 64
    %v776 = vpop.permute.xlu0 %775
    %777 = vrot.lane.b32.xlu0 %v53, 64
    %v778 = vpop.permute.xlu0 %777
    %779 = vrot.lane.b32.xlu0 %v54, 64
    %v780 = vpop.permute.xlu0 %779
    %781 = vrot.lane.b32.xlu0 %v55, 64
    %v782 = vpop.permute.xlu0 %781
    %783 = vrot.lane.b32.xlu0 %v56, 64
    %v784 = vpop.permute.xlu0 %783
    %785 = vrot.lane.b32.xlu0 %v57, 64
    %v786 = vpop.permute.xlu0 %785
    %787 = vrot.lane.b32.xlu0 %v58, 64
    %v788 = vpop.permute.xlu0 %787
    %789 = vrot.lane.b32.xlu0 %v59, 64
    %v790 = vpop.permute.xlu0 %789
    %791 = vrot.lane.b32.xlu0 %v60, 64
    %v792 = vpop.permute.xlu0 %791
    %793 = vrot.lane.b32.xlu0 %v61, 64
    %v794 = vpop.permute.xlu0 %793
    %795 = vrot.lane.b32.xlu0 %v62, 64
    %v796 = vpop.permute.xlu0 %795
    %797 = vrot.lane.b32.xlu0 %v63, 64
    %v798 = vpop.permute.xlu0 %797
    %799 = vrot.lane.b32.xlu0 %v64, 64
    %v800 = vpop.permute.xlu0 %799
    %801 = vrot.lane.b32.xlu0 %v65, 64
    %v802 = vpop.permute.xlu0 %801
    %803 = vrot.lane.b32.xlu0 %v66, 64
    %v804 = vpop.permute.xlu0 %803
    %805 = vrot.lane.b32.xlu0 %v67, 64
    %v806 = vpop.permute.xlu0 %805
    %v807 = vsel %vm68, %v744, 0
    %v809 = vsel %vm68, %v746, 0
    %v811 = vsel %vm68, %v748, 0
    %v813 = vsel %vm68, %v750, 0
    %v815 = vsel %vm68, %v752, 0
    %v817 = vsel %vm68, %v754, 0
    %v819 = vsel %vm68, %v756, 0
    %v821 = vsel %vm68, %v758, 0
    %v823 = vsel %vm68, %v760, 0
    %v825 = vsel %vm68, %v762, 0
    %v827 = vsel %vm68, %v764, 0
    %v829 = vsel %vm68, %v766, 0
    %v831 = vsel %vm68, %v768, 0
    %v833 = vsel %vm68, %v770, 0
    %v835 = vsel %vm68, %v772, 0
    %v837 = vsel %vm68, %v774, 0
    %v839 = vsel %vm68, %v776, 0
    %v841 = vsel %vm68, %v778, 0
    %v843 = vsel %vm68, %v780, 0
    %v845 = vsel %vm68, %v782, 0
    %v847 = vsel %vm68, %v784, 0
    %v849 = vsel %vm68, %v786, 0
    %v851 = vsel %vm68, %v788, 0
    %v853 = vsel %vm68, %v790, 0
    %v855 = vsel %vm68, %v792, 0
    %v857 = vsel %vm68, %v794, 0
    %v859 = vsel %vm68, %v796, 0
    %v861 = vsel %vm68, %v798, 0
    %v863 = vsel %vm68, %v800, 0
    %v865 = vsel %vm68, %v802, 0
    %v867 = vsel %vm68, %v804, 0
    %v869 = vsel %vm68, %v806, 0
    %871 = vmatprep.subr.mxu0 0.0
    %872 = vmatpush1.xpose.msra.mxu0 %v869
    %873 = vmatprep.subr.mxu0 0.0
    %874 = vmatpush1.xpose.msra.mxu0 %v867
    %875 = vmatprep.subr.mxu0 0.0
    %876 = vmatpush1.xpose.msra.mxu0 %v865
    %877 = vmatprep.subr.mxu0 0.0
    %878 = vmatpush1.xpose.msra.mxu0 %v863
    %879 = vmatprep.subr.mxu0 0.0
    %880 = vmatpush1.xpose.msra.mxu0 %v861
    %881 = vmatprep.subr.mxu0 0.0
    %882 = vmatpush1.xpose.msra.mxu0 %v859
    %883 = vmatprep.subr.mxu0 0.0
    %884 = vmatpush1.xpose.msra.mxu0 %v857
    %885 = vmatprep.subr.mxu0 0.0
    %886 = vmatpush1.xpose.msra.mxu0 %v855
    %887 = vmatprep.subr.mxu0 0.0
    %888 = vmatpush1.xpose.msra.mxu0 %v853
    %889 = vmatprep.subr.mxu0 0.0
    %890 = vmatpush1.xpose.msra.mxu0 %v851
    %891 = vmatprep.subr.mxu0 0.0
    %892 = vmatpush1.xpose.msra.mxu0 %v849
    %893 = vmatprep.subr.mxu0 0.0
    %894 = vmatpush1.xpose.msra.mxu0 %v847
    %895 = vmatprep.subr.mxu0 0.0
    %896 = vmatpush1.xpose.msra.mxu0 %v845
    %897 = vmatprep.subr.mxu0 0.0
    %898 = vmatpush1.xpose.msra.mxu0 %v843
    %899 = vmatprep.subr.mxu0 0.0
    %900 = vmatpush1.xpose.msra.mxu0 %v841
    %901 = vmatprep.subr.mxu0 0.0
    %902 = vmatpush1.xpose.msra.mxu0 %v839
    %903 = vmatprep.subr.mxu0 0.0
    %904 = vmatpush2.xpose.msra.mxu0 0.0
    %905 = vmatprep.subr.mxu0 0.0
    %906 = vmatpush2.xpose.msra.mxu0 0.0
    %907 = vmatprep.subr.mxu0 0.0
    %908 = vmatpush2.xpose.msra.mxu0 0.0
    %909 = vmatprep.subr.mxu0 0.0
    %910 = vmatpush2.xpose.msra.mxu0 0.0
    %911 = vmatprep.subr.mxu0 0.0
    %912 = vmatpush2.xpose.msra.mxu0 0.0
    %913 = vmatprep.subr.mxu0 0.0
    %914 = vmatpush2.xpose.msra.mxu0 0.0
    %915 = vmatprep.subr.mxu0 0.0
    %916 = vmatpush2.xpose.msra.mxu0 0.0
    %917 = vmatprep.subr.mxu0 0.0
    %918 = vmatpush2.xpose.msra.mxu0 0.0
    %919 = vmatprep.subr.mxu0 0.0
    %920 = vmatpush2.xpose.msra.mxu0 0.0
    %921 = vmatprep.subr.mxu0 0.0
    %922 = vmatpush2.xpose.msra.mxu0 0.0
    %923 = vmatprep.subr.mxu0 0.0
    %924 = vmatpush2.xpose.msra.mxu0 0.0
    %925 = vmatprep.subr.mxu0 0.0
    %926 = vmatpush2.xpose.msra.mxu0 0.0
    %927 = vmatprep.subr.mxu0 0.0
    %928 = vmatpush2.xpose.msra.mxu0 0.0
    %929 = vmatprep.subr.mxu0 0.0
    %930 = vmatpush2.xpose.msra.mxu0 0.0
    %931 = vmatprep.subr.mxu0 0.0
    %932 = vmatpush2.xpose.msra.mxu0 0.0
    %933 = vmatprep.subr.mxu0 0.0
    %934 = vmatpush2.xpose.msra.mxu0 0.0
    %935 = vmatprep.mubr.f32.mxu0 0.0
    %936 = vmatmul.mubr.f32.gmra.mxu0 %v807
    %v937 = vpop.f32.mrf.mxu0
    %v938 = vadd.f32 0.0, %v937
    %v939 = vpop.f32.mrf.mxu0
    %940 = vmatprep.mubr.f32.mxu0 0.0
    %941 = vmatmul.mubr.f32.gmra.mxu0 %v809
    %v942 = vpop.f32.mrf.mxu0
    %v943 = vadd.f32 0.0, %v942
    %v944 = vpop.f32.mrf.mxu0
    %945 = vmatprep.mubr.f32.mxu0 0.0
    %946 = vmatmul.mubr.f32.gmra.mxu0 %v811
    %v947 = vpop.f32.mrf.mxu0
    %v948 = vadd.f32 0.0, %v947
    %v949 = vpop.f32.mrf.mxu0
    %950 = vmatprep.mubr.f32.mxu0 0.0
    %951 = vmatmul.mubr.f32.gmra.mxu0 %v813
    %v952 = vpop.f32.mrf.mxu0
    %v953 = vadd.f32 0.0, %v952
    %v954 = vpop.f32.mrf.mxu0
    %955 = vmatprep.mubr.f32.mxu0 0.0
    %956 = vmatmul.mubr.f32.gmra.mxu0 %v815
    %v957 = vpop.f32.mrf.mxu0
    %v958 = vadd.f32 0.0, %v957
    %v959 = vpop.f32.mrf.mxu0
    %960 = vmatprep.mubr.f32.mxu0 0.0
    %961 = vmatmul.mubr.f32.gmra.mxu0 %v817
    %v962 = vpop.f32.mrf.mxu0
    %v963 = vadd.f32 0.0, %v962
    %v964 = vpop.f32.mrf.mxu0
    %965 = vmatprep.mubr.f32.mxu0 0.0
    %966 = vmatmul.mubr.f32.gmra.mxu0 %v819
    %v967 = vpop.f32.mrf.mxu0
    %v968 = vadd.f32 0.0, %v967
    %v969 = vpop.f32.mrf.mxu0
    %970 = vmatprep.mubr.f32.mxu0 0.0
    %971 = vmatmul.mubr.f32.gmra.mxu0 %v821
    %v972 = vpop.f32.mrf.mxu0
    %v973 = vadd.f32 0.0, %v972
    %v974 = vpop.f32.mrf.mxu0
    %975 = vmatprep.mubr.f32.mxu0 0.0
    %976 = vmatmul.mubr.f32.gmra.mxu0 %v823
    %v977 = vpop.f32.mrf.mxu0
    %v978 = vadd.f32 0.0, %v977
    %v979 = vpop.f32.mrf.mxu0
    %980 = vmatprep.mubr.f32.mxu0 0.0
    %981 = vmatmul.mubr.f32.gmra.mxu0 %v825
    %v982 = vpop.f32.mrf.mxu0
    %v983 = vadd.f32 0.0, %v982
    %v984 = vpop.f32.mrf.mxu0
    %985 = vmatprep.mubr.f32.mxu0 0.0
    %986 = vmatmul.mubr.f32.gmra.mxu0 %v827
    %v987 = vpop.f32.mrf.mxu0
    %v988 = vadd.f32 0.0, %v987
    %v989 = vpop.f32.mrf.mxu0
    %990 = vmatprep.mubr.f32.mxu0 0.0
    %991 = vmatmul.mubr.f32.gmra.mxu0 %v829
    %v992 = vpop.f32.mrf.mxu0
    %v993 = vadd.f32 0.0, %v992
    %v994 = vpop.f32.mrf.mxu0
    %995 = vmatprep.mubr.f32.mxu0 0.0
    %996 = vmatmul.mubr.f32.gmra.mxu0 %v831
    %v997 = vpop.f32.mrf.mxu0
    %v998 = vadd.f32 0.0, %v997
    %v999 = vpop.f32.mrf.mxu0
    %1000 = vmatprep.mubr.f32.mxu0 0.0
    %1001 = vmatmul.mubr.f32.gmra.mxu0 %v833
    %v1002 = vpop.f32.mrf.mxu0
    %v1003 = vadd.f32 0.0, %v1002
    %v1004 = vpop.f32.mrf.mxu0
    %1005 = vmatprep.mubr.f32.mxu0 0.0
    %1006 = vmatmul.mubr.f32.gmra.mxu0 %v835
    %v1007 = vpop.f32.mrf.mxu0
    %v1008 = vadd.f32 0.0, %v1007
    %v1009 = vpop.f32.mrf.mxu0
    %1010 = vmatprep.mubr.f32.mxu0 0.0
    %1011 = vmatmul.mubr.f32.gmra.mxu0 %v837
    %v1012 = vpop.f32.mrf.mxu0
    %v1013 = vadd.f32 0.0, %v1012
    %v1014 = vpop.f32.mrf.mxu0
    %1015 = vdwg.mxu0
    %v1016 = vld [vmem:[%s5] sm:$0xff]
    %v1017 = vld [vmem:[%s5 + $0x8] sm:$0xff]
    %v1018 = vld [vmem:[%s5 + $0x10] sm:$0xff]
    %v1019 = vld [vmem:[%s5 + $0x18] sm:$0xff]
    %v1020 = vld [vmem:[%s5 + $0x20] sm:$0xff]
    %v1021 = vld [vmem:[%s5 + $0x28] sm:$0xff]
    %v1022 = vld [vmem:[%s5 + $0x30] sm:$0xff]
    %v1023 = vld [vmem:[%s5 + $0x38] sm:$0xff]
    %v1024 = vld [vmem:[%s5 + $0x40] sm:$0xff]
    %v1025 = vld [vmem:[%s5 + $0x48] sm:$0xff]
    %v1026 = vld [vmem:[%s5 + $0x50] sm:$0xff]
    %v1027 = vld [vmem:[%s5 + $0x58] sm:$0xff]
    %v1028 = vld [vmem:[%s5 + $0x60] sm:$0xff]
    %v1029 = vld [vmem:[%s5 + $0x68] sm:$0xff]
    %v1030 = vld [vmem:[%s5 + $0x70] sm:$0xff]
    %v1031 = vld [vmem:[%s5 + $0x78] sm:$0xff]
    %v1032 = vmul.f32 %v938, %v1016
    %v1033 = vmul.f32 %v943, %v1017
    %v1034 = vmul.f32 %v948, %v1018
    %v1035 = vmul.f32 %v953, %v1019
    %v1036 = vmul.f32 %v958, %v1020
    %v1037 = vmul.f32 %v963, %v1021
    %v1038 = vmul.f32 %v968, %v1022
    %v1039 = vmul.f32 %v973, %v1023
    %v1040 = vmul.f32 %v978, %v1024
    %v1041 = vmul.f32 %v983, %v1025
    %v1042 = vmul.f32 %v988, %v1026
    %v1043 = vmul.f32 %v993, %v1027
    %v1044 = vmul.f32 %v998, %v1028
    %v1045 = vmul.f32 %v1003, %v1029
    %v1046 = vmul.f32 %v1008, %v1030
    %v1047 = vmul.f32 %v1013, %v1031
    %v1048 = vmul.f32 %v1032, 0.5
    %v1049 = vmul.f32 %v1033, 0.5
    %v1050 = vmul.f32 %v1034, 0.5
    %v1051 = vmul.f32 %v1035, 0.5
    %v1052 = vmul.f32 %v1036, 0.5
    %v1053 = vmul.f32 %v1037, 0.5
    %v1054 = vmul.f32 %v1038, 0.5
    %v1055 = vmul.f32 %v1039, 0.5
    %v1056 = vmul.f32 %v1040, 0.5
    %v1057 = vmul.f32 %v1041, 0.5
    %v1058 = vmul.f32 %v1042, 0.5
    %v1059 = vmul.f32 %v1043, 0.5
    %v1060 = vmul.f32 %v1044, 0.5
    %v1061 = vmul.f32 %v1045, 0.5
    %v1062 = vmul.f32 %v1046, 0.5
    %v1063 = vmul.f32 %v1047, 0.5
    %v1064 = vtanh.pop %v1048
    %v1065 = vtanh.pop %v1049
    %v1066 = vtanh.pop %v1050
    %v1067 = vtanh.pop %v1051
    %v1068 = vtanh.pop %v1052
    %v1069 = vtanh.pop %v1053
    %v1070 = vtanh.pop %v1054
    %v1071 = vtanh.pop %v1055
    %v1072 = vtanh.pop %v1056
    %v1073 = vtanh.pop %v1057
    %v1074 = vtanh.pop %v1058
    %v1075 = vtanh.pop %v1059
    %v1076 = vtanh.pop %v1060
    %v1077 = vtanh.pop %v1061
    %v1078 = vtanh.pop %v1062
    %v1079 = vtanh.pop %v1063
    %v1080 = vmul.f32 %v1064, 0.5
    %v1081 = vmul.f32 %v1065, 0.5
    %v1082 = vmul.f32 %v1066, 0.5
    %v1083 = vmul.f32 %v1067, 0.5
    %v1084 = vmul.f32 %v1068, 0.5
    %v1085 = vmul.f32 %v1069, 0.5
    %v1086 = vmul.f32 %v1070, 0.5
    %v1087 = vmul.f32 %v1071, 0.5
    %v1088 = vmul.f32 %v1072, 0.5
    %v1089 = vmul.f32 %v1073, 0.5
    %v1090 = vmul.f32 %v1074, 0.5
    %v1091 = vmul.f32 %v1075, 0.5
    %v1092 = vmul.f32 %v1076, 0.5
    %v1093 = vmul.f32 %v1077, 0.5
    %v1094 = vmul.f32 %v1078, 0.5
    %v1095 = vmul.f32 %v1079, 0.5
    %v1096 = vadd.f32 %v1080, 0.5
    %v1097 = vadd.f32 %v1081, 0.5
    %v1098 = vadd.f32 %v1082, 0.5
    %v1099 = vadd.f32 %v1083, 0.5
    %v1100 = vadd.f32 %v1084, 0.5
    %v1101 = vadd.f32 %v1085, 0.5
    %v1102 = vadd.f32 %v1086, 0.5
    %v1103 = vadd.f32 %v1087, 0.5
    %v1104 = vadd.f32 %v1088, 0.5
    %v1105 = vadd.f32 %v1089, 0.5
    %v1106 = vadd.f32 %v1090, 0.5
    %v1107 = vadd.f32 %v1091, 0.5
    %v1108 = vadd.f32 %v1092, 0.5
    %v1109 = vadd.f32 %v1093, 0.5
    %v1110 = vadd.f32 %v1094, 0.5
    %v1111 = vadd.f32 %v1095, 0.5
    %1112 = vrot.lane.b32.xlu0 %v36, 32
    %v1113 = vpop.permute.xlu0 %1112
    %1114 = vrot.lane.b32.xlu0 %v37, 32
    %v1115 = vpop.permute.xlu0 %1114
    %1116 = vrot.lane.b32.xlu0 %v38, 32
    %v1117 = vpop.permute.xlu0 %1116
    %1118 = vrot.lane.b32.xlu0 %v39, 32
    %v1119 = vpop.permute.xlu0 %1118
    %1120 = vrot.lane.b32.xlu0 %v40, 32
    %v1121 = vpop.permute.xlu0 %1120
    %1122 = vrot.lane.b32.xlu0 %v41, 32
    %v1123 = vpop.permute.xlu0 %1122
    %1124 = vrot.lane.b32.xlu0 %v42, 32
    %v1125 = vpop.permute.xlu0 %1124
    %1126 = vrot.lane.b32.xlu0 %v43, 32
    %v1127 = vpop.permute.xlu0 %1126
    %1128 = vrot.lane.b32.xlu0 %v44, 32
    %v1129 = vpop.permute.xlu0 %1128
    %1130 = vrot.lane.b32.xlu0 %v45, 32
    %v1131 = vpop.permute.xlu0 %1130
    %1132 = vrot.lane.b32.xlu0 %v46, 32
    %v1133 = vpop.permute.xlu0 %1132
    %1134 = vrot.lane.b32.xlu0 %v47, 32
    %v1135 = vpop.permute.xlu0 %1134
    %1136 = vrot.lane.b32.xlu0 %v48, 32
    %v1137 = vpop.permute.xlu0 %1136
    %1138 = vrot.lane.b32.xlu0 %v49, 32
    %v1139 = vpop.permute.xlu0 %1138
    %1140 = vrot.lane.b32.xlu0 %v50, 32
    %v1141 = vpop.permute.xlu0 %1140
    %1142 = vrot.lane.b32.xlu0 %v51, 32
    %v1143 = vpop.permute.xlu0 %1142
    %1144 = vrot.lane.b32.xlu0 %v52, 32
    %v1145 = vpop.permute.xlu0 %1144
    %1146 = vrot.lane.b32.xlu0 %v53, 32
    %v1147 = vpop.permute.xlu0 %1146
    %1148 = vrot.lane.b32.xlu0 %v54, 32
    %v1149 = vpop.permute.xlu0 %1148
    %1150 = vrot.lane.b32.xlu0 %v55, 32
    %v1151 = vpop.permute.xlu0 %1150
    %1152 = vrot.lane.b32.xlu0 %v56, 32
    %v1153 = vpop.permute.xlu0 %1152
    %1154 = vrot.lane.b32.xlu0 %v57, 32
    %v1155 = vpop.permute.xlu0 %1154
    %1156 = vrot.lane.b32.xlu0 %v58, 32
    %v1157 = vpop.permute.xlu0 %1156
    %1158 = vrot.lane.b32.xlu0 %v59, 32
    %v1159 = vpop.permute.xlu0 %1158
    %1160 = vrot.lane.b32.xlu0 %v60, 32
    %v1161 = vpop.permute.xlu0 %1160
    %1162 = vrot.lane.b32.xlu0 %v61, 32
    %v1163 = vpop.permute.xlu0 %1162
    %1164 = vrot.lane.b32.xlu0 %v62, 32
    %v1165 = vpop.permute.xlu0 %1164
    %1166 = vrot.lane.b32.xlu0 %v63, 32
    %v1167 = vpop.permute.xlu0 %1166
    %1168 = vrot.lane.b32.xlu0 %v64, 32
    %v1169 = vpop.permute.xlu0 %1168
    %1170 = vrot.lane.b32.xlu0 %v65, 32
    %v1171 = vpop.permute.xlu0 %1170
    %1172 = vrot.lane.b32.xlu0 %v66, 32
    %v1173 = vpop.permute.xlu0 %1172
    %1174 = vrot.lane.b32.xlu0 %v67, 32
    %v1175 = vpop.permute.xlu0 %1174
    %v1176 = vsel %vm68, %v1113, 0
    %v1178 = vsel %vm68, %v1115, 0
    %v1180 = vsel %vm68, %v1117, 0
    %v1182 = vsel %vm68, %v1119, 0
    %v1184 = vsel %vm68, %v1121, 0
    %v1186 = vsel %vm68, %v1123, 0
    %v1188 = vsel %vm68, %v1125, 0
    %v1190 = vsel %vm68, %v1127, 0
    %v1192 = vsel %vm68, %v1129, 0
    %v1194 = vsel %vm68, %v1131, 0
    %v1196 = vsel %vm68, %v1133, 0
    %v1198 = vsel %vm68, %v1135, 0
    %v1200 = vsel %vm68, %v1137, 0
    %v1202 = vsel %vm68, %v1139, 0
    %v1204 = vsel %vm68, %v1141, 0
    %v1206 = vsel %vm68, %v1143, 0
    %v1208 = vsel %vm68, %v1145, 0
    %v1210 = vsel %vm68, %v1147, 0
    %v1212 = vsel %vm68, %v1149, 0
    %v1214 = vsel %vm68, %v1151, 0
    %v1216 = vsel %vm68, %v1153, 0
    %v1218 = vsel %vm68, %v1155, 0
    %v1220 = vsel %vm68, %v1157, 0
    %v1222 = vsel %vm68, %v1159, 0
    %v1224 = vsel %vm68, %v1161, 0
    %v1226 = vsel %vm68, %v1163, 0
    %v1228 = vsel %vm68, %v1165, 0
    %v1230 = vsel %vm68, %v1167, 0
    %v1232 = vsel %vm68, %v1169, 0
    %v1234 = vsel %vm68, %v1171, 0
    %v1236 = vsel %vm68, %v1173, 0
    %v1238 = vsel %vm68, %v1175, 0
    %1240 = vmatprep.subr.mxu0 0.0
    %1241 = vmatpush1.xpose.msra.mxu0 %v1238
    %1242 = vmatprep.subr.mxu0 0.0
    %1243 = vmatpush1.xpose.msra.mxu0 %v1236
    %1244 = vmatprep.subr.mxu0 0.0
    %1245 = vmatpush1.xpose.msra.mxu0 %v1234
    %1246 = vmatprep.subr.mxu0 0.0
    %1247 = vmatpush1.xpose.msra.mxu0 %v1232
    %1248 = vmatprep.subr.mxu0 0.0
    %1249 = vmatpush1.xpose.msra.mxu0 %v1230
    %1250 = vmatprep.subr.mxu0 0.0
    %1251 = vmatpush1.xpose.msra.mxu0 %v1228
    %1252 = vmatprep.subr.mxu0 0.0
    %1253 = vmatpush1.xpose.msra.mxu0 %v1226
    %1254 = vmatprep.subr.mxu0 0.0
    %1255 = vmatpush1.xpose.msra.mxu0 %v1224
    %1256 = vmatprep.subr.mxu0 0.0
    %1257 = vmatpush1.xpose.msra.mxu0 %v1222
    %1258 = vmatprep.subr.mxu0 0.0
    %1259 = vmatpush1.xpose.msra.mxu0 %v1220
    %1260 = vmatprep.subr.mxu0 0.0
    %1261 = vmatpush1.xpose.msra.mxu0 %v1218
    %1262 = vmatprep.subr.mxu0 0.0
    %1263 = vmatpush1.xpose.msra.mxu0 %v1216
    %1264 = vmatprep.subr.mxu0 0.0
    %1265 = vmatpush1.xpose.msra.mxu0 %v1214
    %1266 = vmatprep.subr.mxu0 0.0
    %1267 = vmatpush1.xpose.msra.mxu0 %v1212
    %1268 = vmatprep.subr.mxu0 0.0
    %1269 = vmatpush1.xpose.msra.mxu0 %v1210
    %1270 = vmatprep.subr.mxu0 0.0
    %1271 = vmatpush1.xpose.msra.mxu0 %v1208
    %1272 = vmatprep.subr.mxu0 0.0
    %1273 = vmatpush2.xpose.msra.mxu0 0.0
    %1274 = vmatprep.subr.mxu0 0.0
    %1275 = vmatpush2.xpose.msra.mxu0 0.0
    %1276 = vmatprep.subr.mxu0 0.0
    %1277 = vmatpush2.xpose.msra.mxu0 0.0
    %1278 = vmatprep.subr.mxu0 0.0
    %1279 = vmatpush2.xpose.msra.mxu0 0.0
    %1280 = vmatprep.subr.mxu0 0.0
    %1281 = vmatpush2.xpose.msra.mxu0 0.0
    %1282 = vmatprep.subr.mxu0 0.0
    %1283 = vmatpush2.xpose.msra.mxu0 0.0
    %1284 = vmatprep.subr.mxu0 0.0
    %1285 = vmatpush2.xpose.msra.mxu0 0.0
    %1286 = vmatprep.subr.mxu0 0.0
    %1287 = vmatpush2.xpose.msra.mxu0 0.0
    %1288 = vmatprep.subr.mxu0 0.0
    %1289 = vmatpush2.xpose.msra.mxu0 0.0
    %1290 = vmatprep.subr.mxu0 0.0
    %1291 = vmatpush2.xpose.msra.mxu0 0.0
    %1292 = vmatprep.subr.mxu0 0.0
    %1293 = vmatpush2.xpose.msra.mxu0 0.0
    %1294 = vmatprep.subr.mxu0 0.0
    %1295 = vmatpush2.xpose.msra.mxu0 0.0
    %1296 = vmatprep.subr.mxu0 0.0
    %1297 = vmatpush2.xpose.msra.mxu0 0.0
    %1298 = vmatprep.subr.mxu0 0.0
    %1299 = vmatpush2.xpose.msra.mxu0 0.0
    %1300 = vmatprep.subr.mxu0 0.0
    %1301 = vmatpush2.xpose.msra.mxu0 0.0
    %1302 = vmatprep.subr.mxu0 0.0
    %1303 = vmatpush2.xpose.msra.mxu0 0.0
    %1304 = vmatprep.mubr.f32.mxu0 0.0
    %1305 = vmatmul.mubr.f32.gmra.mxu0 %v1176
    %v1306 = vpop.f32.mrf.mxu0
    %v1307 = vadd.f32 0.0, %v1306
    %v1308 = vpop.f32.mrf.mxu0
    %1309 = vmatprep.mubr.f32.mxu0 0.0
    %1310 = vmatmul.mubr.f32.gmra.mxu0 %v1178
    %v1311 = vpop.f32.mrf.mxu0
    %v1312 = vadd.f32 0.0, %v1311
    %v1313 = vpop.f32.mrf.mxu0
    %1314 = vmatprep.mubr.f32.mxu0 0.0
    %1315 = vmatmul.mubr.f32.gmra.mxu0 %v1180
    %v1316 = vpop.f32.mrf.mxu0
    %v1317 = vadd.f32 0.0, %v1316
    %v1318 = vpop.f32.mrf.mxu0
    %1319 = vmatprep.mubr.f32.mxu0 0.0
    %1320 = vmatmul.mubr.f32.gmra.mxu0 %v1182
    %v1321 = vpop.f32.mrf.mxu0
    %v1322 = vadd.f32 0.0, %v1321
    %v1323 = vpop.f32.mrf.mxu0
    %1324 = vmatprep.mubr.f32.mxu0 0.0
    %1325 = vmatmul.mubr.f32.gmra.mxu0 %v1184
    %v1326 = vpop.f32.mrf.mxu0
    %v1327 = vadd.f32 0.0, %v1326
    %v1328 = vpop.f32.mrf.mxu0
    %1329 = vmatprep.mubr.f32.mxu0 0.0
    %1330 = vmatmul.mubr.f32.gmra.mxu0 %v1186
    %v1331 = vpop.f32.mrf.mxu0
    %v1332 = vadd.f32 0.0, %v1331
    %v1333 = vpop.f32.mrf.mxu0
    %1334 = vmatprep.mubr.f32.mxu0 0.0
    %1335 = vmatmul.mubr.f32.gmra.mxu0 %v1188
    %v1336 = vpop.f32.mrf.mxu0
    %v1337 = vadd.f32 0.0, %v1336
    %v1338 = vpop.f32.mrf.mxu0
    %1339 = vmatprep.mubr.f32.mxu0 0.0
    %1340 = vmatmul.mubr.f32.gmra.mxu0 %v1190
    %v1341 = vpop.f32.mrf.mxu0
    %v1342 = vadd.f32 0.0, %v1341
    %v1343 = vpop.f32.mrf.mxu0
    %1344 = vmatprep.mubr.f32.mxu0 0.0
    %1345 = vmatmul.mubr.f32.gmra.mxu0 %v1192
    %v1346 = vpop.f32.mrf.mxu0
    %v1347 = vadd.f32 0.0, %v1346
    %v1348 = vpop.f32.mrf.mxu0
    %1349 = vmatprep.mubr.f32.mxu0 0.0
    %1350 = vmatmul.mubr.f32.gmra.mxu0 %v1194
    %v1351 = vpop.f32.mrf.mxu0
    %v1352 = vadd.f32 0.0, %v1351
    %v1353 = vpop.f32.mrf.mxu0
    %1354 = vmatprep.mubr.f32.mxu0 0.0
    %1355 = vmatmul.mubr.f32.gmra.mxu0 %v1196
    %v1356 = vpop.f32.mrf.mxu0
    %v1357 = vadd.f32 0.0, %v1356
    %v1358 = vpop.f32.mrf.mxu0
    %1359 = vmatprep.mubr.f32.mxu0 0.0
    %1360 = vmatmul.mubr.f32.gmra.mxu0 %v1198
    %v1361 = vpop.f32.mrf.mxu0
    %v1362 = vadd.f32 0.0, %v1361
    %v1363 = vpop.f32.mrf.mxu0
    %1364 = vmatprep.mubr.f32.mxu0 0.0
    %1365 = vmatmul.mubr.f32.gmra.mxu0 %v1200
    %v1366 = vpop.f32.mrf.mxu0
    %v1367 = vadd.f32 0.0, %v1366
    %v1368 = vpop.f32.mrf.mxu0
    %1369 = vmatprep.mubr.f32.mxu0 0.0
    %1370 = vmatmul.mubr.f32.gmra.mxu0 %v1202
    %v1371 = vpop.f32.mrf.mxu0
    %v1372 = vadd.f32 0.0, %v1371
    %v1373 = vpop.f32.mrf.mxu0
    %1374 = vmatprep.mubr.f32.mxu0 0.0
    %1375 = vmatmul.mubr.f32.gmra.mxu0 %v1204
    %v1376 = vpop.f32.mrf.mxu0
    %v1377 = vadd.f32 0.0, %v1376
    %v1378 = vpop.f32.mrf.mxu0
    %1379 = vmatprep.mubr.f32.mxu0 0.0
    %1380 = vmatmul.mubr.f32.gmra.mxu0 %v1206
    %v1381 = vpop.f32.mrf.mxu0
    %v1382 = vadd.f32 0.0, %v1381
    %v1383 = vpop.f32.mrf.mxu0
    %1384 = vdwg.mxu0
    %v1385 = vmul.f32 %v1307, 0.5
    %v1386 = vmul.f32 %v1312, 0.5
    %v1387 = vmul.f32 %v1317, 0.5
    %v1388 = vmul.f32 %v1322, 0.5
    %v1389 = vmul.f32 %v1327, 0.5
    %v1390 = vmul.f32 %v1332, 0.5
    %v1391 = vmul.f32 %v1337, 0.5
    %v1392 = vmul.f32 %v1342, 0.5
    %v1393 = vmul.f32 %v1347, 0.5
    %v1394 = vmul.f32 %v1352, 0.5
    %v1395 = vmul.f32 %v1357, 0.5
    %v1396 = vmul.f32 %v1362, 0.5
    %v1397 = vmul.f32 %v1367, 0.5
    %v1398 = vmul.f32 %v1372, 0.5
    %v1399 = vmul.f32 %v1377, 0.5
    %v1400 = vmul.f32 %v1382, 0.5
    %v1401 = vtanh.pop %v1385
    %v1402 = vtanh.pop %v1386
    %v1403 = vtanh.pop %v1387
    %v1404 = vtanh.pop %v1388
    %v1405 = vtanh.pop %v1389
    %v1406 = vtanh.pop %v1390
    %v1407 = vtanh.pop %v1391
    %v1408 = vtanh.pop %v1392
    %v1409 = vtanh.pop %v1393
    %v1410 = vtanh.pop %v1394
    %v1411 = vtanh.pop %v1395
    %v1412 = vtanh.pop %v1396
    %v1413 = vtanh.pop %v1397
    %v1414 = vtanh.pop %v1398
    %v1415 = vtanh.pop %v1399
    %v1416 = vtanh.pop %v1400
    %v1417 = vmul.f32 %v1401, 0.5
    %v1418 = vmul.f32 %v1402, 0.5
    %v1419 = vmul.f32 %v1403, 0.5
    %v1420 = vmul.f32 %v1404, 0.5
    %v1421 = vmul.f32 %v1405, 0.5
    %v1422 = vmul.f32 %v1406, 0.5
    %v1423 = vmul.f32 %v1407, 0.5
    %v1424 = vmul.f32 %v1408, 0.5
    %v1425 = vmul.f32 %v1409, 0.5
    %v1426 = vmul.f32 %v1410, 0.5
    %v1427 = vmul.f32 %v1411, 0.5
    %v1428 = vmul.f32 %v1412, 0.5
    %v1429 = vmul.f32 %v1413, 0.5
    %v1430 = vmul.f32 %v1414, 0.5
    %v1431 = vmul.f32 %v1415, 0.5
    %v1432 = vmul.f32 %v1416, 0.5
    %v1433 = vadd.f32 %v1417, 0.5
    %v1434 = vadd.f32 %v1418, 0.5
    %v1435 = vadd.f32 %v1419, 0.5
    %v1436 = vadd.f32 %v1420, 0.5
    %v1437 = vadd.f32 %v1421, 0.5
    %v1438 = vadd.f32 %v1422, 0.5
    %v1439 = vadd.f32 %v1423, 0.5
    %v1440 = vadd.f32 %v1424, 0.5
    %v1441 = vadd.f32 %v1425, 0.5
    %v1442 = vadd.f32 %v1426, 0.5
    %v1443 = vadd.f32 %v1427, 0.5
    %v1444 = vadd.f32 %v1428, 0.5
    %v1445 = vadd.f32 %v1429, 0.5
    %v1446 = vadd.f32 %v1430, 0.5
    %v1447 = vadd.f32 %v1431, 0.5
    %v1448 = vadd.f32 %v1432, 0.5
    %s1449 = sld [smem:[#allocation2]]
    %s1450 = sld [smem:[#allocation2 + $0x1]]
    %s1451 = sld [smem:[#allocation2 + $0x2]]
    %v1452 = vstv %s1449
    %v1453 = vmul.f32 %v1452, %v358
    %v1454 = vmul.f32 %v1452, %v359
    %v1455 = vmul.f32 %v1452, %v360
    %v1456 = vmul.f32 %v1452, %v361
    %v1457 = vmul.f32 %v1452, %v362
    %v1458 = vmul.f32 %v1452, %v363
    %v1459 = vmul.f32 %v1452, %v364
    %v1460 = vmul.f32 %v1452, %v365
    %v1461 = vmul.f32 %v1452, %v366
    %v1462 = vmul.f32 %v1452, %v367
    %v1463 = vmul.f32 %v1452, %v368
    %v1464 = vmul.f32 %v1452, %v369
    %v1465 = vmul.f32 %v1452, %v370
    %v1466 = vmul.f32 %v1452, %v371
    %v1467 = vmul.f32 %v1452, %v372
    %v1468 = vmul.f32 %v1452, %v373
    %v1469 = vstv %s1450
    %v1470 = vmul.f32 %v1469, %v727
    %v1471 = vmul.f32 %v1469, %v728
    %v1472 = vmul.f32 %v1469, %v729
    %v1473 = vmul.f32 %v1469, %v730
    %v1474 = vmul.f32 %v1469, %v731
    %v1475 = vmul.f32 %v1469, %v732
    %v1476 = vmul.f32 %v1469, %v733
    %v1477 = vmul.f32 %v1469, %v734
    %v1478 = vmul.f32 %v1469, %v735
    %v1479 = vmul.f32 %v1469, %v736
    %v1480 = vmul.f32 %v1469, %v737
    %v1481 = vmul.f32 %v1469, %v738
    %v1482 = vmul.f32 %v1469, %v739
    %v1483 = vmul.f32 %v1469, %v740
    %v1484 = vmul.f32 %v1469, %v741
    %v1485 = vmul.f32 %v1469, %v742
    %v1486 = vadd.f32 %v1453, %v1470
    %v1487 = vadd.f32 %v1454, %v1471
    %v1488 = vadd.f32 %v1455, %v1472
    %v1489 = vadd.f32 %v1456, %v1473
    %v1490 = vadd.f32 %v1457, %v1474
    %v1491 = vadd.f32 %v1458, %v1475
    %v1492 = vadd.f32 %v1459, %v1476
    %v1493 = vadd.f32 %v1460, %v1477
    %v1494 = vadd.f32 %v1461, %v1478
    %v1495 = vadd.f32 %v1462, %v1479
    %v1496 = vadd.f32 %v1463, %v1480
    %v1497 = vadd.f32 %v1464, %v1481
    %v1498 = vadd.f32 %v1465, %v1482
    %v1499 = vadd.f32 %v1466, %v1483
    %v1500 = vadd.f32 %v1467, %v1484
    %v1501 = vadd.f32 %v1468, %v1485
    %v1502 = vstv %s1451
    %v1503 = vmul.f32 %v1502, %v1096
    %v1504 = vmul.f32 %v1502, %v1097
    %v1505 = vmul.f32 %v1502, %v1098
    %v1506 = vmul.f32 %v1502, %v1099
    %v1507 = vmul.f32 %v1502, %v1100
    %v1508 = vmul.f32 %v1502, %v1101
    %v1509 = vmul.f32 %v1502, %v1102
    %v1510 = vmul.f32 %v1502, %v1103
    %v1511 = vmul.f32 %v1502, %v1104
    %v1512 = vmul.f32 %v1502, %v1105
    %v1513 = vmul.f32 %v1502, %v1106
    %v1514 = vmul.f32 %v1502, %v1107
    %v1515 = vmul.f32 %v1502, %v1108
    %v1516 = vmul.f32 %v1502, %v1109
    %v1517 = vmul.f32 %v1502, %v1110
    %v1518 = vmul.f32 %v1502, %v1111
    %v1519 = vadd.f32 %v1486, %v1503
    %v1520 = vadd.f32 %v1487, %v1504
    %v1521 = vadd.f32 %v1488, %v1505
    %v1522 = vadd.f32 %v1489, %v1506
    %v1523 = vadd.f32 %v1490, %v1507
    %v1524 = vadd.f32 %v1491, %v1508
    %v1525 = vadd.f32 %v1492, %v1509
    %v1526 = vadd.f32 %v1493, %v1510
    %v1527 = vadd.f32 %v1494, %v1511
    %v1528 = vadd.f32 %v1495, %v1512
    %v1529 = vadd.f32 %v1496, %v1513
    %v1530 = vadd.f32 %v1497, %v1514
    %v1531 = vadd.f32 %v1498, %v1515
    %v1532 = vadd.f32 %v1499, %v1516
    %v1533 = vadd.f32 %v1500, %v1517
    %v1534 = vadd.f32 %v1501, %v1518
    %v1535 = vsub.f32 %v1519, %v1433
    %v1536 = vsub.f32 %v1520, %v1434
    %v1537 = vsub.f32 %v1521, %v1435
    %v1538 = vsub.f32 %v1522, %v1436
    %v1539 = vsub.f32 %v1523, %v1437
    %v1540 = vsub.f32 %v1524, %v1438
    %v1541 = vsub.f32 %v1525, %v1439
    %v1542 = vsub.f32 %v1526, %v1440
    %v1543 = vsub.f32 %v1527, %v1441
    %v1544 = vsub.f32 %v1528, %v1442
    %v1545 = vsub.f32 %v1529, %v1443
    %v1546 = vsub.f32 %v1530, %v1444
    %v1547 = vsub.f32 %v1531, %v1445
    %v1548 = vsub.f32 %v1532, %v1446
    %v1549 = vsub.f32 %v1533, %v1447
    %v1550 = vsub.f32 %v1534, %v1448
    %v1551 = vld [vmem:[%s3] sm:$0xff]
    %v1552 = vld [vmem:[%s3 + $0x8] sm:$0xff]
    %v1553 = vld [vmem:[%s3 + $0x10] sm:$0xff]
    %v1554 = vld [vmem:[%s3 + $0x18] sm:$0xff]
    %v1555 = vld [vmem:[%s3 + $0x20] sm:$0xff]
    %v1556 = vld [vmem:[%s3 + $0x28] sm:$0xff]
    %v1557 = vld [vmem:[%s3 + $0x30] sm:$0xff]
    %v1558 = vld [vmem:[%s3 + $0x38] sm:$0xff]
    %v1559 = vld [vmem:[%s3 + $0x40] sm:$0xff]
    %v1560 = vld [vmem:[%s3 + $0x48] sm:$0xff]
    %v1561 = vld [vmem:[%s3 + $0x50] sm:$0xff]
    %v1562 = vld [vmem:[%s3 + $0x58] sm:$0xff]
    %v1563 = vld [vmem:[%s3 + $0x60] sm:$0xff]
    %v1564 = vld [vmem:[%s3 + $0x68] sm:$0xff]
    %v1565 = vld [vmem:[%s3 + $0x70] sm:$0xff]
    %v1566 = vld [vmem:[%s3 + $0x78] sm:$0xff]
    %v1567 = vmul.f32 %v1535, %v1551
    %v1568 = vmul.f32 %v1536, %v1552
    %v1569 = vmul.f32 %v1537, %v1553
    %v1570 = vmul.f32 %v1538, %v1554
    %v1571 = vmul.f32 %v1539, %v1555
    %v1572 = vmul.f32 %v1540, %v1556
    %v1573 = vmul.f32 %v1541, %v1557
    %v1574 = vmul.f32 %v1542, %v1558
    %v1575 = vmul.f32 %v1543, %v1559
    %v1576 = vmul.f32 %v1544, %v1560
    %v1577 = vmul.f32 %v1545, %v1561
    %v1578 = vmul.f32 %v1546, %v1562
    %v1579 = vmul.f32 %v1547, %v1563
    %v1580 = vmul.f32 %v1548, %v1564
    %v1581 = vmul.f32 %v1549, %v1565
    %v1582 = vmul.f32 %v1550, %v1566
    %v1583 = vadd.f32 %v1567, %v1433
    %v1584 = vadd.f32 %v1568, %v1434
    %v1585 = vadd.f32 %v1569, %v1435
    %v1586 = vadd.f32 %v1570, %v1436
    %v1587 = vadd.f32 %v1571, %v1437
    %v1588 = vadd.f32 %v1572, %v1438
    %v1589 = vadd.f32 %v1573, %v1439
    %v1590 = vadd.f32 %v1574, %v1440
    %v1591 = vadd.f32 %v1575, %v1441
    %v1592 = vadd.f32 %v1576, %v1442
    %v1593 = vadd.f32 %v1577, %v1443
    %v1594 = vadd.f32 %v1578, %v1444
    %v1595 = vadd.f32 %v1579, %v1445
    %v1596 = vadd.f32 %v1580, %v1446
    %v1597 = vadd.f32 %v1581, %v1447
    %v1598 = vadd.f32 %v1582, %v1448
    %1599 = vst [vmem:[%s6] sm:$0xff] %v1583
    %1600 = vst [vmem:[%s6 + $0x8] sm:$0xff] %v1584
    %1601 = vst [vmem:[%s6 + $0x10] sm:$0xff] %v1585
    %1602 = vst [vmem:[%s6 + $0x18] sm:$0xff] %v1586
    %1603 = vst [vmem:[%s6 + $0x20] sm:$0xff] %v1587
    %1604 = vst [vmem:[%s6 + $0x28] sm:$0xff] %v1588
    %1605 = vst [vmem:[%s6 + $0x30] sm:$0xff] %v1589
    %1606 = vst [vmem:[%s6 + $0x38] sm:$0xff] %v1590
    %1607 = vst [vmem:[%s6 + $0x40] sm:$0xff] %v1591
    %1608 = vst [vmem:[%s6 + $0x48] sm:$0xff] %v1592
    %1609 = vst [vmem:[%s6 + $0x50] sm:$0xff] %v1593
    %1610 = vst [vmem:[%s6 + $0x58] sm:$0xff] %v1594
    %1611 = vst [vmem:[%s6 + $0x60] sm:$0xff] %v1595
    %1612 = vst [vmem:[%s6 + $0x68] sm:$0xff] %v1596
    %1613 = vst [vmem:[%s6 + $0x70] sm:$0xff] %v1597
    %1614 = vst [vmem:[%s6 + $0x78] sm:$0xff] %v1598
    // Predicated region
    $region30: #{meta_model_forward.3} parent=1 // pred_check
      _
    $region31: #{meta_model_forward.3} parent=1 // pred_check_branch
      %1616 = sbr.rel (0) target = $region33
    $region32: #{meta_model_forward.3} parent=1 // pred_region
      _
    $region33: #{meta_model_forward.3} parent=1 // pred_fallthru
      _
    // Predicated region
    $region34: #{meta_model_forward.3} parent=1 // pred_check
      _
    $region35: #{meta_model_forward.3} parent=1 // pred_check_branch
      %1618 = sbr.rel (0) target = $region37
    $region36: #{meta_model_forward.3} parent=1 // pred_region
      _
    $region37: #{meta_model_forward.3} parent=1 // pred_fallthru
      _
    %1619 = vsyncpa [#allocation3], 1

</llo_original>
